<compile_context>
chip_gen: v6e
topology: v6e:2x2x1
jax: 0.10.0
libtpu: 0.0.40
codegen_flags: <defaults>
</compile_context>

<pallas_src>
import jax
import jax.numpy as jnp
from jax.experimental import pallas as pl
from jax.experimental.pallas import tpu as pltpu


def critic_kernel(x_ref, w1_ref, b1_ref, w2_ref, b2_ref, w3_ref, b3_ref, o_ref):
    # fc1: (H, n_states)bf16 @ (n_states, tile)bf16 -> (H, tile) f32 accumulate.
    h1 = jnp.dot(w1_ref[...], x_ref[...], preferred_element_type=jnp.float32)
    h1 = jnp.maximum(h1 + b1_ref[...], 0.0)
    # fc2: (H, H)bf16 @ (H, tile)bf16 -> (H, tile) f32.
    h2 = jnp.dot(w2_ref[...], h1.astype(jnp.bfloat16),
                 preferred_element_type=jnp.float32)
    h2 = jnp.maximum(h2 + b2_ref[...], 0.0)
    # fc3 (output width 1): VPU multiply + sublane (XLU) reduction, skip the MXU.
    out_row = jnp.sum(h2 * w3_ref[...], axis=0, keepdims=True) + b3_ref[0, 0]
    # Lane-dense (1, batch_tile) store.
    o_ref[...] = out_row.astype(o_ref.dtype)


def _pick_batch_tile(B):
    for t in (1024, 512, 256, 128):
        if B % t == 0:
            return t
    return B  # small batch: single full-extent block (still legal)


def critic_forward(x, params, *, batch_tile=None):
    """x: (B, n_states) float32.

    params (PyTorch nn.Linear layout): w1 (H, n_states), b1 (H, 1),
    w2 (H, H), b2 (H, 1), w3 (H, 1)  [= fc3.weight.T], b3 (1, 1).
    Returns (B, 1) float32.
    """
    B, n_states = x.shape
    H = params["w1"].shape[0]

    if batch_tile is None:
        batch_tile = _pick_batch_tile(B)
    assert B % batch_tile == 0, "batch_tile must divide B"
    assert batch_tile == B or batch_tile % 128 == 0, (
        "batch_tile must be a multiple of 128 (lane width) or equal to B")

    # Batch on the lane axis; bf16 for the MXU operands, f32 everywhere else.
    x_t = x.T.astype(jnp.bfloat16)                 # (n_states, B)
    w1 = params["w1"].astype(jnp.bfloat16)         # (H, n_states)
    w2 = params["w2"].astype(jnp.bfloat16)         # (H, H)
    b1 = params["b1"].astype(jnp.float32)          # (H, 1)
    b2 = params["b2"].astype(jnp.float32)          # (H, 1)
    w3 = params["w3"].astype(jnp.float32)          # (H, 1), used on the VPU
    b3 = params["b3"].astype(jnp.float32)          # (1, 1), SMEM scalar

    grid = (B // batch_tile,)
    in_specs = [
        pl.BlockSpec((n_states, batch_tile), lambda i: (0, i)),   # x (transposed)
        pl.BlockSpec((H, n_states), lambda i: (0, 0)),            # w1 (resident)
        pl.BlockSpec((H, 1), lambda i: (0, 0)),                   # b1
        pl.BlockSpec((H, H), lambda i: (0, 0)),                   # w2
        pl.BlockSpec((H, 1), lambda i: (0, 0)),                   # b2
        pl.BlockSpec((H, 1), lambda i: (0, 0)),                   # w3
        pl.BlockSpec(memory_space=pltpu.MemorySpace.SMEM),        # b3 scalar
    ]
    out_spec = pl.BlockSpec((1, batch_tile), lambda i: (0, i))

    out_row = pl.pallas_call(
        critic_kernel,
        out_shape=jax.ShapeDtypeStruct((1, B), jnp.float32),
        grid=grid,
        in_specs=in_specs,
        out_specs=out_spec,
        compiler_params=pltpu.CompilerParams(
            dimension_semantics=("parallel",)),
    )(x_t, w1, b1, w2, b2, w3, b3)

    return out_row.reshape(B, 1)


def init_critic_params(key, n_states, hidden_dim):
    """Deterministic init mirroring PyTorch nn.Linear (weights stored (out, in))."""
    ks = jax.random.split(key, 6)

    def linear_init(kw, kb, fan_in, fan_out):
        bound = 1.0 / jnp.sqrt(fan_in)
        w = jax.random.uniform(kw, (fan_out, fan_in), jnp.float32, -bound, bound)
        b = jax.random.uniform(kb, (fan_out, 1), jnp.float32, -bound, bound)
        return w, b

    w1, b1 = linear_init(ks[0], ks[1], n_states, hidden_dim)
    w2, b2 = linear_init(ks[2], ks[3], hidden_dim, hidden_dim)
    w3t, b3 = linear_init(ks[4], ks[5], hidden_dim, 1)        # (1, H), (1, 1)
    return {"w1": w1, "b1": b1, "w2": w2, "b2": b2,
            "w3": w3t.T, "b3": b3}                            # w3 stored (H, 1)


def critic_ref(x, p, *, match_kernel_dtypes=True):
    """Pure-JAX reference. If match_kernel_dtypes, round MXU operands to bf16
    exactly like the kernel does (accumulation stays f32)."""
    if match_kernel_dtypes:
        xx = x.astype(jnp.bfloat16).astype(jnp.float32)
        w1 = p["w1"].astype(jnp.bfloat16).astype(jnp.float32)
        w2 = p["w2"].astype(jnp.bfloat16).astype(jnp.float32)
    else:
        xx, w1, w2 = x, p["w1"], p["w2"]
    h1 = jnp.maximum(xx @ w1.T + p["b1"].T, 0.0)
    if match_kernel_dtypes:
        h1 = h1.astype(jnp.bfloat16).astype(jnp.float32)
    h2 = jnp.maximum(h1 @ w2.T + p["b2"].T, 0.0)
    return h2 @ p["w3"] + p["b3"]


if __name__ == "__main__":
    # hidden_dim matches the module's default (256); batch sized so the grid
    # has 2 steps (pipelined DMA, shardable across v7x's 2 TensorCores).
    B, n_states, hidden_dim = 256, 16, 256
    key = jax.random.PRNGKey(0)
    kx, kp = jax.random.split(key)
    x = jax.random.normal(kx, (B, n_states), jnp.float32)
    params = init_critic_params(kp, n_states, hidden_dim)

    out = critic_forward(x, params, batch_tile=128)
    out = jax.block_until_ready(out)

    ref = critic_ref(x, params, match_kernel_dtypes=True)
    assert out.shape == (B, 1)
    assert jnp.allclose(out, ref, atol=1e-3, rtol=1e-3), float(
        jnp.max(jnp.abs(out - ref)))
    print("KERNEL_OK")
</pallas_src>

<mosaic_0001>
module attributes {stable_mosaic.version = 11 : i64} {
  func.func @critic_kernel(%arg0: i32, %arg1: memref<16x128xbf16, #tpu.memory_space<vmem>>, %arg2: memref<256x16xbf16, #tpu.memory_space<vmem>>, %arg3: memref<256x1xf32, #tpu.memory_space<vmem>>, %arg4: memref<256x256xbf16, #tpu.memory_space<vmem>>, %arg5: memref<256x1xf32, #tpu.memory_space<vmem>>, %arg6: memref<256x1xf32, #tpu.memory_space<vmem>>, %arg7: memref<1x1xf32, #tpu.memory_space<smem>>, %arg8: memref<1x128xf32, #tpu.memory_space<vmem>>) attributes {dimension_semantics = [#tpu.dimension_semantics<parallel>], iteration_bounds = array<i64: 2>, scalar_prefetch = 0 : i64, scratch_operands = 0 : i64, tpu.core_type = #tpu.core_type<tc>, window_params = [{transform_indices = @transform_0, window_bounds = array<i64: 16, 128>}, {pipeline_mode = #tpu.pipeline_mode<synchronous>, transform_indices = @transform_1, window_bounds = array<i64: 256, 16>}, {pipeline_mode = #tpu.pipeline_mode<synchronous>, transform_indices = @transform_2, window_bounds = array<i64: 256, 1>}, {pipeline_mode = #tpu.pipeline_mode<synchronous>, transform_indices = @transform_3, window_bounds = array<i64: 256, 256>}, {pipeline_mode = #tpu.pipeline_mode<synchronous>, transform_indices = @transform_4, window_bounds = array<i64: 256, 1>}, {pipeline_mode = #tpu.pipeline_mode<synchronous>, transform_indices = @transform_5, window_bounds = array<i64: 256, 1>}, {transform_indices = @transform_6, window_bounds = array<i64: 1, 1>}, {transform_indices = @transform_7, window_bounds = array<i64: 1, 128>}]} {
    %c0 = arith.constant 0 : index
    %c0_0 = arith.constant 0 : index
    %0 = vector.load %arg2[%c0, %c0_0] : memref<256x16xbf16, #tpu.memory_space<vmem>>, vector<256x16xbf16>
    %c0_1 = arith.constant 0 : index
    %c0_2 = arith.constant 0 : index
    %1 = vector.load %arg1[%c0_1, %c0_2] : memref<16x128xbf16, #tpu.memory_space<vmem>>, vector<16x128xbf16>
    %cst = arith.constant dense<0.000000e+00> : vector<256x128xf32>
    %2 = tpu.matmul %0, %1, %cst {dimension_numbers = #tpu.dot_dimension_numbers<[1], [0], [0], [1], [0, 0, 1, 1], [], []>} : vector<256x16xbf16>, vector<16x128xbf16>, vector<256x128xf32> -> vector<256x128xf32>
    %c0_3 = arith.constant 0 : index
    %c0_4 = arith.constant 0 : index
    %3 = vector.load %arg3[%c0_3, %c0_4] : memref<256x1xf32, #tpu.memory_space<vmem>>, vector<256x1xf32>
    %4 = vector.broadcast %3 : vector<256x1xf32> to vector<256x128xf32>
    %5 = arith.addf %2, %4 : vector<256x128xf32>
    %cst_5 = arith.constant 0.000000e+00 : f32
    %6 = vector.broadcast %cst_5 : f32 to vector<256x128xf32>
    %7 = arith.maximumf %5, %6 : vector<256x128xf32>
    %c0_6 = arith.constant 0 : index
    %c0_7 = arith.constant 0 : index
    %8 = vector.load %arg4[%c0_6, %c0_7] : memref<256x256xbf16, #tpu.memory_space<vmem>>, vector<256x256xbf16>
    %9 = arith.truncf %7 : vector<256x128xf32> to vector<256x128xbf16>
    %cst_8 = arith.constant dense<0.000000e+00> : vector<256x128xf32>
    %10 = tpu.matmul %8, %9, %cst_8 {dimension_numbers = #tpu.dot_dimension_numbers<[1], [0], [0], [1], [0, 0, 1, 1], [], []>} : vector<256x256xbf16>, vector<256x128xbf16>, vector<256x128xf32> -> vector<256x128xf32>
    %c0_9 = arith.constant 0 : index
    %c0_10 = arith.constant 0 : index
    %11 = vector.load %arg5[%c0_9, %c0_10] : memref<256x1xf32, #tpu.memory_space<vmem>>, vector<256x1xf32>
    %12 = vector.broadcast %11 : vector<256x1xf32> to vector<256x128xf32>
    %13 = arith.addf %10, %12 : vector<256x128xf32>
    %cst_11 = arith.constant 0.000000e+00 : f32
    %14 = vector.broadcast %cst_11 : f32 to vector<256x128xf32>
    %15 = arith.maximumf %13, %14 : vector<256x128xf32>
    %c0_12 = arith.constant 0 : index
    %c0_13 = arith.constant 0 : index
    %16 = vector.load %arg6[%c0_12, %c0_13] : memref<256x1xf32, #tpu.memory_space<vmem>>, vector<256x1xf32>
    %17 = vector.broadcast %16 : vector<256x1xf32> to vector<256x128xf32>
    %18 = arith.mulf %15, %17 : vector<256x128xf32>
    %cst_14 = arith.constant dense<0.000000e+00> : vector<128xf32>
    %19 = vector.multi_reduction <add>, %18, %cst_14 [0] : vector<256x128xf32> to vector<128xf32>
    %20 = vector.shape_cast %19 : vector<128xf32> to vector<1x128xf32>
    %c0_15 = arith.constant 0 : index
    %c0_16 = arith.constant 0 : index
    %21 = memref.load %arg7[%c0_15, %c0_16] : memref<1x1xf32, #tpu.memory_space<smem>>
    %22 = vector.broadcast %21 : f32 to vector<1x128xf32>
    %23 = arith.addf %20, %22 : vector<1x128xf32>
    %c0_17 = arith.constant 0 : index
    %c0_18 = arith.constant 0 : index
    %24 = vector.load %arg8[%c0_17, %c0_18] : memref<1x128xf32, #tpu.memory_space<vmem>>, vector<1x128xf32>
    tpu.vector_store %arg8[%c0_17, %c0_18], %23 {strides = array<i32>} : memref<1x128xf32, #tpu.memory_space<vmem>>, vector<1x128xf32>,
    return
  }
  func.func @transform_0(%arg0: i32) -> (i32, i32) {
    %c0_i32 = arith.constant 0 : i32
    %c0_i32_0 = arith.constant 0 : i32
    return %c0_i32, %arg0 : i32, i32
  }
  func.func @transform_1(%arg0: i32) -> (i32, i32) {
    %c0_i32 = arith.constant 0 : i32
    %c0_i32_0 = arith.constant 0 : i32
    %c0_i32_1 = arith.constant 0 : i32
    return %c0_i32, %c0_i32_0 : i32, i32
  }
  func.func @transform_2(%arg0: i32) -> (i32, i32) {
    %c0_i32 = arith.constant 0 : i32
    %c0_i32_0 = arith.constant 0 : i32
    %c0_i32_1 = arith.constant 0 : i32
    return %c0_i32, %c0_i32_0 : i32, i32
  }
  func.func @transform_3(%arg0: i32) -> (i32, i32) {
    %c0_i32 = arith.constant 0 : i32
    %c0_i32_0 = arith.constant 0 : i32
    %c0_i32_1 = arith.constant 0 : i32
    return %c0_i32, %c0_i32_0 : i32, i32
  }
  func.func @transform_4(%arg0: i32) -> (i32, i32) {
    %c0_i32 = arith.constant 0 : i32
    %c0_i32_0 = arith.constant 0 : i32
    %c0_i32_1 = arith.constant 0 : i32
    return %c0_i32, %c0_i32_0 : i32, i32
  }
  func.func @transform_5(%arg0: i32) -> (i32, i32) {
    %c0_i32 = arith.constant 0 : i32
    %c0_i32_0 = arith.constant 0 : i32
    %c0_i32_1 = arith.constant 0 : i32
    return %c0_i32, %c0_i32_0 : i32, i32
  }
  func.func @transform_6(%arg0: i32) -> (i32, i32) {
    %c0_i32 = arith.constant 0 : i32
    %c0_i32_0 = arith.constant 0 : i32
    %c0_i32_1 = arith.constant 0 : i32
    return %c0_i32, %c0_i32_0 : i32, i32
  }
  func.func @transform_7(%arg0: i32) -> (i32, i32) {
    %c0_i32 = arith.constant 0 : i32
    %c0_i32_0 = arith.constant 0 : i32
    return %c0_i32, %arg0 : i32, i32
  }
}

</mosaic_0001>

<llo_original>
// kernel: tpu_custom_call.1
$region0: #{tpu_custom_call.1}
  #allocation0 [shape = 'u32[]', space=smem, size = 0x4, offset = 0x4, fixed_abs, tag = 'smem constant byte address 0x4 - core index']
  #allocation1 [shape = 'u32[144,128]{1,0:T(1,128)}', space=vmem, size = 0x12000, scoped, tag = 'internal scratch']
  #allocation2 [shape = 'f32[1,1]{1,0:T(1,128)S(6)}', space=smem, size = 0x200, scoped, tag = 'scoped memory for tpu_custom_call.1']
  %s0 = inlined_call_operand.vmem [shape: bf16[16,256], index: 0, kind: input, shape index: {}]
  %s1 = inlined_call_operand.vmem [shape: bf16[256,16], index: 1, kind: input, shape index: {}]
  %s2 = inlined_call_operand.vmem [shape: f32[256,1], index: 2, kind: input, shape index: {}]
  %s3 = inlined_call_operand.vmem [shape: bf16[256,256], index: 3, kind: input, shape index: {}]
  %s4 = inlined_call_operand.vmem [shape: f32[256,1], index: 4, kind: input, shape index: {}]
  %s5 = inlined_call_operand.vmem [shape: f32[256,1], index: 5, kind: input, shape index: {}]
  %s6 = inlined_call_operand.<no memory space> [shape: f32[1,1], index: 6, kind: input, shape index: {}]
  %s7 = inlined_call_operand.hbm [shape: f32[1,256], index: 7, kind: output, shape index: {}]
  %s8 = sld [smem:[#allocation0]]
  $region102: #{tpu_custom_call.1} parent=0
    _
  %s10 = ssub.s32 1, %s8
  %s11 = scalar_select 0, %s10, %s8
  %12 = sst [smem:[#allocation2]] %s6
  $region1: #{tpu_custom_call.1} parent=0
    #allocation3 [shape = 'u8[8192]{0}', space=vmem, size = 0x2000, scoped, tag = 'input window, operand 0']
    #allocation4 [shape = 'u8[1024]{0}', space=vmem, size = 0x400, scoped, tag = 'output window, operand 0']
    #allocation5 [shape = 's32[2]{0}', space=sflag, size = 0x8, scoped, tag = 'scoped memory for tpu_custom_call.1']
    %13 = vsyncpa [#allocation5], 0
    %s14 = scalar_lea.sflag [#allocation5], 1
    %15 = vsyncpa %s14, 0
    loop: start=0, step=1, limit=4
    $region2: #{tpu_custom_call.1} parent=1 // loop_pre_header
      _
    $region3: #{tpu_custom_call.1} parent=1 // loop_header
      %s17 = sphi 0, %s21
      %p18 = scmp.ge.s32.totalorder %s17, 4
      %s27 = sphi 0, %s29
      %s30 = sphi 0, %s27
      %s31 = sphi 0, %s30
      %s47 = sphi 0, %s31
      %s51 = sphi 0, %s51
      %s53 = sphi 0, %s51
      %s54 = sphi 0, %s53
      %s68 = sphi 0, %s54
      %s72 = sphi 0, %s72
      %s74 = sphi 0, %s72
      %s75 = sphi 0, %s74
      %s89 = sphi 0, %s75
      %s93 = sphi 0, %s93
      %s95 = sphi 0, %s93
      %s96 = sphi 0, %s95
      %s110 = sphi 0, %s96
      %s114 = sphi 0, %s114
      %s116 = sphi 0, %s114
      %s117 = sphi 0, %s116
      %s131 = sphi 0, %s117
      %s135 = sphi 0, %s135
      %s137 = sphi 0, %s135
      %s138 = sphi 0, %s137
      %s152 = sphi 0, %s138
      %s156 = sphi 0, %s156
      %s158 = sphi 0, %s156
      %s159 = sphi 0, %s158
      %s173 = sphi 0, %s159
      %s179 = sphi 0, %s181
      %s182 = sphi 0, %s179
      %s183 = sphi 0, %s182
      %s199 = sphi 0, %s183
    $region4: #{tpu_custom_call.1} parent=1 // loop_header_branch
      %20 = sbr.rel (%p18) target = $region8
    $region5: #{tpu_custom_call.1} parent=1 // loop_body
      %s22 = ssub.s32 %s17, 1
      %s23 = ssub.s32 %s17, 2
      %s24 = sadd.s32 %s17, 1
      %s25 = ssub.s32 %s17, %s24
      %p26 = scmp.eq.s32.totalorder %s25, 0
      %s28 = sadd.s32 %s27, 1
      %s29 = scalar_select %p26, %s27, %s28
      %p32 = pneg %p26
      %p33 = scmp.eq.s32.totalorder %s17, 1
      %p34 = por %p32, %p33
      %p35 = scmp.ne.s32.totalorder %s27, %s30
      %p36 = scmp.eq.s32.totalorder %s17, 0
      %p37 = por %p35, %p36
      %p38 = scmp.ne.s32.totalorder %s27, %s30
      %p39 = scmp.eq.s32.totalorder %s22, 1
      %p40 = por %p38, %p39
      %p41 = scmp.ne.s32.totalorder %s30, %s31
      %p42 = scmp.eq.s32.totalorder %s22, 0
      %p43 = por %p41, %p42
      %p44 = scmp.ne.s32.totalorder %s30, %s31
      %p45 = scmp.eq.s32.totalorder %s23, 1
      %p46 = por %p44, %p45
      %p48 = scmp.ne.s32.totalorder %s31, %s47
      %p49 = scmp.eq.s32.totalorder %s23, 0
      %p50 = por %p48, %p49
      %s52 = sadd.s32 %s51, 1
      %p55 = scmp.eq.s32.totalorder %s17, 1
      %p56 = scmp.ne.s32.totalorder %s51, %s53
      %p57 = scmp.eq.s32.totalorder %s17, 0
      %p58 = por %p56, %p57
      %p59 = scmp.ne.s32.totalorder %s51, %s53
      %p60 = scmp.eq.s32.totalorder %s22, 1
      %p61 = por %p59, %p60
      %p62 = scmp.ne.s32.totalorder %s53, %s54
      %p63 = scmp.eq.s32.totalorder %s22, 0
      %p64 = por %p62, %p63
      %p65 = scmp.ne.s32.totalorder %s53, %s54
      %p66 = scmp.eq.s32.totalorder %s23, 1
      %p67 = por %p65, %p66
      %p69 = scmp.ne.s32.totalorder %s54, %s68
      %p70 = scmp.eq.s32.totalorder %s23, 0
      %p71 = por %p69, %p70
      %s73 = sadd.s32 %s72, 1
      %p76 = scmp.eq.s32.totalorder %s17, 1
      %p77 = scmp.ne.s32.totalorder %s72, %s74
      %p78 = scmp.eq.s32.totalorder %s17, 0
      %p79 = por %p77, %p78
      %p80 = scmp.ne.s32.totalorder %s72, %s74
      %p81 = scmp.eq.s32.totalorder %s22, 1
      %p82 = por %p80, %p81
      %p83 = scmp.ne.s32.totalorder %s74, %s75
      %p84 = scmp.eq.s32.totalorder %s22, 0
      %p85 = por %p83, %p84
      %p86 = scmp.ne.s32.totalorder %s74, %s75
      %p87 = scmp.eq.s32.totalorder %s23, 1
      %p88 = por %p86, %p87
      %p90 = scmp.ne.s32.totalorder %s75, %s89
      %p91 = scmp.eq.s32.totalorder %s23, 0
      %p92 = por %p90, %p91
      %s94 = sadd.s32 %s93, 1
      %p97 = scmp.eq.s32.totalorder %s17, 1
      %p98 = scmp.ne.s32.totalorder %s93, %s95
      %p99 = scmp.eq.s32.totalorder %s17, 0
      %p100 = por %p98, %p99
      %p101 = scmp.ne.s32.totalorder %s93, %s95
      %p102 = scmp.eq.s32.totalorder %s22, 1
      %p103 = por %p101, %p102
      %p104 = scmp.ne.s32.totalorder %s95, %s96
      %p105 = scmp.eq.s32.totalorder %s22, 0
      %p106 = por %p104, %p105
      %p107 = scmp.ne.s32.totalorder %s95, %s96
      %p108 = scmp.eq.s32.totalorder %s23, 1
      %p109 = por %p107, %p108
      %p111 = scmp.ne.s32.totalorder %s96, %s110
      %p112 = scmp.eq.s32.totalorder %s23, 0
      %p113 = por %p111, %p112
      %s115 = sadd.s32 %s114, 1
      %p118 = scmp.eq.s32.totalorder %s17, 1
      %p119 = scmp.ne.s32.totalorder %s114, %s116
      %p120 = scmp.eq.s32.totalorder %s17, 0
      %p121 = por %p119, %p120
      %p122 = scmp.ne.s32.totalorder %s114, %s116
      %p123 = scmp.eq.s32.totalorder %s22, 1
      %p124 = por %p122, %p123
      %p125 = scmp.ne.s32.totalorder %s116, %s117
      %p126 = scmp.eq.s32.totalorder %s22, 0
      %p127 = por %p125, %p126
      %p128 = scmp.ne.s32.totalorder %s116, %s117
      %p129 = scmp.eq.s32.totalorder %s23, 1
      %p130 = por %p128, %p129
      %p132 = scmp.ne.s32.totalorder %s117, %s131
      %p133 = scmp.eq.s32.totalorder %s23, 0
      %p134 = por %p132, %p133
      %s136 = sadd.s32 %s135, 1
      %p139 = scmp.eq.s32.totalorder %s17, 1
      %p140 = scmp.ne.s32.totalorder %s135, %s137
      %p141 = scmp.eq.s32.totalorder %s17, 0
      %p142 = por %p140, %p141
      %p143 = scmp.ne.s32.totalorder %s135, %s137
      %p144 = scmp.eq.s32.totalorder %s22, 1
      %p145 = por %p143, %p144
      %p146 = scmp.ne.s32.totalorder %s137, %s138
      %p147 = scmp.eq.s32.totalorder %s22, 0
      %p148 = por %p146, %p147
      %p149 = scmp.ne.s32.totalorder %s137, %s138
      %p150 = scmp.eq.s32.totalorder %s23, 1
      %p151 = por %p149, %p150
      %p153 = scmp.ne.s32.totalorder %s138, %s152
      %p154 = scmp.eq.s32.totalorder %s23, 0
      %p155 = por %p153, %p154
      %s157 = sadd.s32 %s156, 1
      %p160 = scmp.eq.s32.totalorder %s17, 1
      %p161 = scmp.ne.s32.totalorder %s156, %s158
      %p162 = scmp.eq.s32.totalorder %s17, 0
      %p163 = por %p161, %p162
      %p164 = scmp.ne.s32.totalorder %s156, %s158
      %p165 = scmp.eq.s32.totalorder %s22, 1
      %p166 = por %p164, %p165
      %p167 = scmp.ne.s32.totalorder %s158, %s159
      %p168 = scmp.eq.s32.totalorder %s22, 0
      %p169 = por %p167, %p168
      %p170 = scmp.ne.s32.totalorder %s158, %s159
      %p171 = scmp.eq.s32.totalorder %s23, 1
      %p172 = por %p170, %p171
      %p174 = scmp.ne.s32.totalorder %s159, %s173
      %p175 = scmp.eq.s32.totalorder %s23, 0
      %p176 = por %p174, %p175
      %s177 = ssub.s32 %s17, %s24
      %p178 = scmp.eq.s32.totalorder %s177, 0
      %s180 = sadd.s32 %s179, 1
      %s181 = scalar_select %p178, %s179, %s180
      %p184 = pneg %p178
      %p185 = scmp.eq.s32.totalorder %s17, 1
      %p186 = por %p184, %p185
      %p187 = scmp.ne.s32.totalorder %s179, %s182
      %p188 = scmp.eq.s32.totalorder %s17, 0
      %p189 = por %p187, %p188
      %p190 = scmp.ne.s32.totalorder %s179, %s182
      %p191 = scmp.eq.s32.totalorder %s22, 1
      %p192 = por %p190, %p191
      %p193 = scmp.ne.s32.totalorder %s182, %s183
      %p194 = scmp.eq.s32.totalorder %s22, 0
      %p195 = por %p193, %p194
      %p196 = scmp.ne.s32.totalorder %s182, %s183
      %p197 = scmp.eq.s32.totalorder %s23, 1
      %p198 = por %p196, %p197
      %p200 = scmp.ne.s32.totalorder %s183, %s199
      %p201 = scmp.eq.s32.totalorder %s23, 0
      %p202 = por %p200, %p201
      %p203 = scmp.le.s32.totalorder 1, %s17
      %p204 = scmp.lt.s32.totalorder %s17, 3
      %p205 = pnand %p203, %p204
      %p206 = pneg %p205
      // Predicated region
      $region9: #{tpu_custom_call.1} parent=5 // pred_check
        _
      $region10: #{tpu_custom_call.1} parent=5 // pred_check_branch
        %208 = sbr.rel (%p205) target = $region12
      $region11: #{tpu_custom_call.1} parent=5 // pred_region
        %s209 = ssub.s32 %s17, 1
        // Predicated region
        $region13: #{tpu_custom_call.1} parent=11 // pred_check
          %p210 = pneg %p64
        $region14: #{tpu_custom_call.1} parent=11 // pred_check_branch
          %212 = sbr.rel (%p210) target = $region16
        $region15: #{tpu_custom_call.1} parent=11 // pred_region
          _
        $region16: #{tpu_custom_call.1} parent=11 // pred_fallthru
          _
        // Predicated region
        $region17: #{tpu_custom_call.1} parent=11 // pred_check
          %p213 = pneg %p85
        $region18: #{tpu_custom_call.1} parent=11 // pred_check_branch
          %215 = sbr.rel (%p213) target = $region20
        $region19: #{tpu_custom_call.1} parent=11 // pred_region
          _
        $region20: #{tpu_custom_call.1} parent=11 // pred_fallthru
          _
        // Predicated region
        $region21: #{tpu_custom_call.1} parent=11 // pred_check
          %p216 = pneg %p106
        $region22: #{tpu_custom_call.1} parent=11 // pred_check_branch
          %218 = sbr.rel (%p216) target = $region24
        $region23: #{tpu_custom_call.1} parent=11 // pred_region
          _
        $region24: #{tpu_custom_call.1} parent=11 // pred_fallthru
          _
        // Predicated region
        $region25: #{tpu_custom_call.1} parent=11 // pred_check
          %p219 = pneg %p127
        $region26: #{tpu_custom_call.1} parent=11 // pred_check_branch
          %221 = sbr.rel (%p219) target = $region28
        $region27: #{tpu_custom_call.1} parent=11 // pred_region
          _
        $region28: #{tpu_custom_call.1} parent=11 // pred_fallthru
          _
        // Predicated region
        $region29: #{tpu_custom_call.1} parent=11 // pred_check
          %p222 = pneg %p148
        $region30: #{tpu_custom_call.1} parent=11 // pred_check_branch
          %224 = sbr.rel (%p222) target = $region32
        $region31: #{tpu_custom_call.1} parent=11 // pred_region
          _
        $region32: #{tpu_custom_call.1} parent=11 // pred_fallthru
          _
        // Predicated region
        $region33: #{tpu_custom_call.1} parent=11 // pred_check
          %p225 = pneg %p169
        $region34: #{tpu_custom_call.1} parent=11 // pred_check_branch
          %227 = sbr.rel (%p225) target = $region36
        $region35: #{tpu_custom_call.1} parent=11 // pred_region
          _
        $region36: #{tpu_custom_call.1} parent=11 // pred_fallthru
          _
      $region12: #{tpu_custom_call.1} parent=5 // pred_fallthru
        _
      %p228 = scmp.lt.s32.totalorder %s17, 2
      // Predicated region
      $region37: #{tpu_custom_call.1} parent=5 // pred_check
        %p229 = pneg %p228
      $region38: #{tpu_custom_call.1} parent=5 // pred_check_branch
        %231 = sbr.rel (%p229) target = $region40
      $region39: #{tpu_custom_call.1} parent=5 // pred_region
        // Predicated region
        $region41: #{tpu_custom_call.1} parent=39 // pred_check
          %p232 = pneg %p37
        $region42: #{tpu_custom_call.1} parent=39 // pred_check_branch
          %234 = sbr.rel (%p232) target = $region44
        $region43: #{tpu_custom_call.1} parent=39 // pred_region
          %s235 = sand.u32 %s27, 1
          %s236 = sand.u32 %s27, 1
          %s237 = smul.addr %s236, 8
          %s238 = scalar_lea.vmem [#allocation3], %s237
          %s239 = smul.addr %s17, 4
          %s240 = scalar_lea.vmem %s0, %s239
          // Predicated region
          $region45: #{tpu_custom_call.1} parent=43 // pred_check
            _
          $region46: #{tpu_custom_call.1} parent=43 // pred_check_branch
            %242 = sbr.rel (0) target = $region48
          $region47: #{tpu_custom_call.1} parent=43 // pred_region
            // Predicated region
            $region49: #{tpu_custom_call.1} parent=47 // pred_check
              _
            $region50: #{tpu_custom_call.1} parent=47 // pred_check_branch
              %244 = sbr.rel target = $region52
            $region51: #{tpu_custom_call.1} parent=47 // pred_region
              // Predicated region
              $region64: #{tpu_custom_call.1} parent=51 // pred_check
                _
              $region65: #{tpu_custom_call.1} parent=51 // pred_check_branch
                %262 = sbr.rel (0) target = $region67
              $region66: #{tpu_custom_call.1} parent=51 // pred_region
                loop: start=0, step=1, limit=1
                $region68: #{tpu_custom_call.1} parent=66 // loop_pre_header
                  _
                $region69: #{tpu_custom_call.1} parent=66 // loop_header
                  %s264 = sphi 0, %s268
                  %p265 = scmp.ge.s32.totalorder %s264, 1
                  %s269 = sphi %s240, %s240
                  %s270 = sphi %s238, %s238
                $region70: #{tpu_custom_call.1} parent=66 // loop_header_branch
                  %267 = sbr.rel (%p265) target = $region74
                $region71: #{tpu_custom_call.1} parent=66 // loop_body
                  _
                $region72: #{tpu_custom_call.1} parent=66 // loop_footer
                  %s268 = sadd.s32 1, %s264
                $region73: #{tpu_custom_call.1} parent=66 // loop_footer_branch
                  %263 = sbr.rel target = $region69
                $region74: #{tpu_custom_call.1} parent=66 // loop_exit
                  _
                %s272 = ssub.s32 16, 1
                loop: start=0, step=1, limit=1
                $region75: #{tpu_custom_call.1} parent=66 // loop_pre_header
                  _
                $region76: #{tpu_custom_call.1} parent=66 // loop_header
                  %s274 = sphi 0, %s278
                  %p275 = scmp.ge.s32.totalorder %s274, 1
                  %s279 = sphi %s240, %s240
                  %s280 = sphi %s238, %s238
                $region77: #{tpu_custom_call.1} parent=66 // loop_header_branch
                  %277 = sbr.rel (%p275) target = $region81
                $region78: #{tpu_custom_call.1} parent=66 // loop_body
                  %v281 = vld [vmem:[%s279] sm:%s272]
                  %282 = vst [vmem:[%s280] sm:%s272] %v281
                  %v283 = vld [vmem:[%s279 + $0x8] sm:%s272]
                  %284 = vst [vmem:[%s280 + $0x4] sm:%s272] %v283
                $region79: #{tpu_custom_call.1} parent=66 // loop_footer
                  %s278 = sadd.s32 1, %s274
                $region80: #{tpu_custom_call.1} parent=66 // loop_footer_branch
                  %273 = sbr.rel target = $region76
                $region81: #{tpu_custom_call.1} parent=66 // loop_exit
                  _
              $region67: #{tpu_custom_call.1} parent=51 // pred_fallthru
                _
            $region52: #{tpu_custom_call.1} parent=47 // pred_fallthru
              _
            // Predicated region
            $region53: #{tpu_custom_call.1} parent=47 // pred_check
              _
            $region54: #{tpu_custom_call.1} parent=47 // pred_check_branch
              %246 = sbr.rel (0) target = $region56
            $region55: #{tpu_custom_call.1} parent=47 // pred_region
              %s248 = ssub.s32 16, 1
              loop: start=0, step=1, limit=1
              $region57: #{tpu_custom_call.1} parent=55 // loop_pre_header
                _
              $region58: #{tpu_custom_call.1} parent=55 // loop_header
                %s250 = sphi 0, %s254
                %p251 = scmp.ge.s32.totalorder %s250, 1
                %s255 = sphi %s240, %s240
                %s256 = sphi %s238, %s238
              $region59: #{tpu_custom_call.1} parent=55 // loop_header_branch
                %253 = sbr.rel (%p251) target = $region63
              $region60: #{tpu_custom_call.1} parent=55 // loop_body
                %v257 = vld [vmem:[%s255] sm:%s248]
                %258 = vst [vmem:[%s256] sm:%s248] %v257
                %v259 = vld [vmem:[%s255 + $0x8] sm:%s248]
                %260 = vst [vmem:[%s256 + $0x4] sm:%s248] %v259
              $region61: #{tpu_custom_call.1} parent=55 // loop_footer
                %s254 = sadd.s32 1, %s250
              $region62: #{tpu_custom_call.1} parent=55 // loop_footer_branch
                %249 = sbr.rel target = $region58
              $region63: #{tpu_custom_call.1} parent=55 // loop_exit
                _
            $region56: #{tpu_custom_call.1} parent=47 // pred_fallthru
              _
          $region48: #{tpu_custom_call.1} parent=43 // pred_fallthru
            _
          %285 = vnop
        $region44: #{tpu_custom_call.1} parent=39 // pred_fallthru
          _
      $region40: #{tpu_custom_call.1} parent=5 // pred_fallthru
        _
      %p286 = scmp.le.s32.totalorder 1, %s17
      %p287 = scmp.lt.s32.totalorder %s17, 3
      %p288 = pnand %p286, %p287
      %p289 = pneg %p288
      // Predicated region
      $region82: #{tpu_custom_call.1} parent=5 // pred_check
        _
      $region83: #{tpu_custom_call.1} parent=5 // pred_check_branch
        %291 = sbr.rel (%p288) target = $region85
      $region84: #{tpu_custom_call.1} parent=5 // pred_region
        %s292 = ssub.s32 %s17, 1
        %s293 = sand.u32 %s30, 1
        %s294 = sand.u32 %s30, 1
        %s295 = smul.addr %s294, 8
        %s296 = scalar_lea.vmem [#allocation3], %s295
        // Predicated region
        $region86: #{tpu_custom_call.1} parent=84 // pred_check
          %p297 = pneg %p43
        $region87: #{tpu_custom_call.1} parent=84 // pred_check_branch
          %299 = sbr.rel (%p297) target = $region89
        $region88: #{tpu_custom_call.1} parent=84 // pred_region
          _
        $region89: #{tpu_custom_call.1} parent=84 // pred_fallthru
          _
        %s300 = sand.u32 %s30, 1
        %s301 = sand.u32 %s30, 1
        %s302 = smul.addr %s301, 8
        %s303 = scalar_lea.vmem [#allocation3], %s302
        %p304 = pneg %p43
        %p305 = pneg %p40
        %p306 = pneg %p64
        %p307 = pneg %p61
        %p308 = pneg %p85
        %p309 = pneg %p82
        %p310 = pneg %p106
        %p311 = pneg %p103
        %p312 = pneg %p127
        %p313 = pneg %p124
        %p314 = pneg %p148
        %p315 = pneg %p145
        %p316 = pneg %p169
        %p317 = pneg %p166
        %p318 = pneg %p195
        %p319 = pneg %p192
        %s320 = sand.u32 %s182, 1
        %s321 = scalar_lea.sflag [#allocation5], %s320
        %s322 = sand.u32 %s182, 1
        %s323 = scalar_lea.vmem [#allocation4], %s322
        %v325 = vld [vmem:[%s1] sm:$0xf]
        %v326 = vld [vmem:[%s1 + $0x4] sm:$0xf]
        %v327 = vld [vmem:[%s1 + $0x8] sm:$0xf]
        %v328 = vld [vmem:[%s1 + $0xc] sm:$0xf]
        %v329 = vld [vmem:[%s1 + $0x10] sm:$0xf]
        %v330 = vld [vmem:[%s1 + $0x14] sm:$0xf]
        %v331 = vld [vmem:[%s1 + $0x18] sm:$0xf]
        %v332 = vld [vmem:[%s1 + $0x1c] sm:$0xf]
        %v333 = vld [vmem:[%s1 + $0x20] sm:$0xf]
        %v334 = vld [vmem:[%s1 + $0x24] sm:$0xf]
        %v335 = vld [vmem:[%s1 + $0x28] sm:$0xf]
        %v336 = vld [vmem:[%s1 + $0x2c] sm:$0xf]
        %v337 = vld [vmem:[%s1 + $0x30] sm:$0xf]
        %v338 = vld [vmem:[%s1 + $0x34] sm:$0xf]
        %v339 = vld [vmem:[%s1 + $0x38] sm:$0xf]
        %v340 = vld [vmem:[%s1 + $0x3c] sm:$0xf]
        %v341 = vld [vmem:[%s1 + $0x40] sm:$0xf]
        %v342 = vld [vmem:[%s1 + $0x44] sm:$0xf]
        %v343 = vld [vmem:[%s1 + $0x48] sm:$0xf]
        %v344 = vld [vmem:[%s1 + $0x4c] sm:$0xf]
        %v345 = vld [vmem:[%s1 + $0x50] sm:$0xf]
        %v346 = vld [vmem:[%s1 + $0x54] sm:$0xf]
        %v347 = vld [vmem:[%s1 + $0x58] sm:$0xf]
        %v348 = vld [vmem:[%s1 + $0x5c] sm:$0xf]
        %v349 = vld [vmem:[%s1 + $0x60] sm:$0xf]
        %v350 = vld [vmem:[%s1 + $0x64] sm:$0xf]
        %v351 = vld [vmem:[%s1 + $0x68] sm:$0xf]
        %v352 = vld [vmem:[%s1 + $0x6c] sm:$0xf]
        %v353 = vld [vmem:[%s1 + $0x70] sm:$0xf]
        %v354 = vld [vmem:[%s1 + $0x74] sm:$0xf]
        %v355 = vld [vmem:[%s1 + $0x78] sm:$0xf]
        %v356 = vld [vmem:[%s1 + $0x7c] sm:$0xf]
        %v357 = vld [vmem:[%s296] sm:$0xf]
        %v358 = vld [vmem:[%s296 + $0x4] sm:$0xf]
        %v359 = vld [vmem:[%s2] sm:$0xff]
        %v360 = vld [vmem:[%s2 + $0x8] sm:$0xff]
        %v361 = vld [vmem:[%s2 + $0x10] sm:$0xff]
        %v362 = vld [vmem:[%s2 + $0x18] sm:$0xff]
        %v363 = vld [vmem:[%s2 + $0x20] sm:$0xff]
        %v364 = vld [vmem:[%s2 + $0x28] sm:$0xff]
        %v365 = vld [vmem:[%s2 + $0x30] sm:$0xff]
        %v366 = vld [vmem:[%s2 + $0x38] sm:$0xff]
        %v367 = vld [vmem:[%s2 + $0x40] sm:$0xff]
        %v368 = vld [vmem:[%s2 + $0x48] sm:$0xff]
        %v369 = vld [vmem:[%s2 + $0x50] sm:$0xff]
        %v370 = vld [vmem:[%s2 + $0x58] sm:$0xff]
        %v371 = vld [vmem:[%s2 + $0x60] sm:$0xff]
        %v372 = vld [vmem:[%s2 + $0x68] sm:$0xff]
        %v373 = vld [vmem:[%s2 + $0x70] sm:$0xff]
        %v374 = vld [vmem:[%s2 + $0x78] sm:$0xff]
        %v375 = vld [vmem:[%s2 + $0x80] sm:$0xff]
        %v376 = vld [vmem:[%s2 + $0x88] sm:$0xff]
        %v377 = vld [vmem:[%s2 + $0x90] sm:$0xff]
        %v378 = vld [vmem:[%s2 + $0x98] sm:$0xff]
        %v379 = vld [vmem:[%s2 + $0xa0] sm:$0xff]
        %v380 = vld [vmem:[%s2 + $0xa8] sm:$0xff]
        %v381 = vld [vmem:[%s2 + $0xb0] sm:$0xff]
        %v382 = vld [vmem:[%s2 + $0xb8] sm:$0xff]
        %v383 = vld [vmem:[%s2 + $0xc0] sm:$0xff]
        %v384 = vld [vmem:[%s2 + $0xc8] sm:$0xff]
        %v385 = vld [vmem:[%s2 + $0xd0] sm:$0xff]
        %v386 = vld [vmem:[%s2 + $0xd8] sm:$0xff]
        %v387 = vld [vmem:[%s2 + $0xe0] sm:$0xff]
        %v388 = vld [vmem:[%s2 + $0xe8] sm:$0xff]
        %v389 = vld [vmem:[%s2 + $0xf0] sm:$0xff]
        %v390 = vld [vmem:[%s2 + $0xf8] sm:$0xff]
        %392 = vset.pattern.permute.xlu0 0
        %393 = vperm.xlu0 %392, %v359
        %v394 = vpop.permute.xlu0 %393
        %397 = vset.pattern.permute.xlu0 0
        %398 = vperm.xlu0 %397, %v360
        %v399 = vpop.permute.xlu0 %398
        %402 = vset.pattern.permute.xlu0 0
        %403 = vperm.xlu0 %402, %v361
        %v404 = vpop.permute.xlu0 %403
        %407 = vset.pattern.permute.xlu0 0
        %408 = vperm.xlu0 %407, %v362
        %v409 = vpop.permute.xlu0 %408
        %412 = vset.pattern.permute.xlu0 0
        %413 = vperm.xlu0 %412, %v363
        %v414 = vpop.permute.xlu0 %413
        %417 = vset.pattern.permute.xlu0 0
        %418 = vperm.xlu0 %417, %v364
        %v419 = vpop.permute.xlu0 %418
        %422 = vset.pattern.permute.xlu0 0
        %423 = vperm.xlu0 %422, %v365
        %v424 = vpop.permute.xlu0 %423
        %427 = vset.pattern.permute.xlu0 0
        %428 = vperm.xlu0 %427, %v366
        %v429 = vpop.permute.xlu0 %428
        %432 = vset.pattern.permute.xlu0 0
        %433 = vperm.xlu0 %432, %v367
        %v434 = vpop.permute.xlu0 %433
        %437 = vset.pattern.permute.xlu0 0
        %438 = vperm.xlu0 %437, %v368
        %v439 = vpop.permute.xlu0 %438
        %442 = vset.pattern.permute.xlu0 0
        %443 = vperm.xlu0 %442, %v369
        %v444 = vpop.permute.xlu0 %443
        %447 = vset.pattern.permute.xlu0 0
        %448 = vperm.xlu0 %447, %v370
        %v449 = vpop.permute.xlu0 %448
        %452 = vset.pattern.permute.xlu0 0
        %453 = vperm.xlu0 %452, %v371
        %v454 = vpop.permute.xlu0 %453
        %457 = vset.pattern.permute.xlu0 0
        %458 = vperm.xlu0 %457, %v372
        %v459 = vpop.permute.xlu0 %458
        %462 = vset.pattern.permute.xlu0 0
        %463 = vperm.xlu0 %462, %v373
        %v464 = vpop.permute.xlu0 %463
        %467 = vset.pattern.permute.xlu0 0
        %468 = vperm.xlu0 %467, %v374
        %v469 = vpop.permute.xlu0 %468
        %472 = vset.pattern.permute.xlu0 0
        %473 = vperm.xlu0 %472, %v375
        %v474 = vpop.permute.xlu0 %473
        %477 = vset.pattern.permute.xlu0 0
        %478 = vperm.xlu0 %477, %v376
        %v479 = vpop.permute.xlu0 %478
        %482 = vset.pattern.permute.xlu0 0
        %483 = vperm.xlu0 %482, %v377
        %v484 = vpop.permute.xlu0 %483
        %487 = vset.pattern.permute.xlu0 0
        %488 = vperm.xlu0 %487, %v378
        %v489 = vpop.permute.xlu0 %488
        %492 = vset.pattern.permute.xlu0 0
        %493 = vperm.xlu0 %492, %v379
        %v494 = vpop.permute.xlu0 %493
        %497 = vset.pattern.permute.xlu0 0
        %498 = vperm.xlu0 %497, %v380
        %v499 = vpop.permute.xlu0 %498
        %502 = vset.pattern.permute.xlu0 0
        %503 = vperm.xlu0 %502, %v381
        %v504 = vpop.permute.xlu0 %503
        %507 = vset.pattern.permute.xlu0 0
        %508 = vperm.xlu0 %507, %v382
        %v509 = vpop.permute.xlu0 %508
        %512 = vset.pattern.permute.xlu0 0
        %513 = vperm.xlu0 %512, %v383
        %v514 = vpop.permute.xlu0 %513
        %517 = vset.pattern.permute.xlu0 0
        %518 = vperm.xlu0 %517, %v384
        %v519 = vpop.permute.xlu0 %518
        %522 = vset.pattern.permute.xlu0 0
        %523 = vperm.xlu0 %522, %v385
        %v524 = vpop.permute.xlu0 %523
        %527 = vset.pattern.permute.xlu0 0
        %528 = vperm.xlu0 %527, %v386
        %v529 = vpop.permute.xlu0 %528
        %532 = vset.pattern.permute.xlu0 0
        %533 = vperm.xlu0 %532, %v387
        %v534 = vpop.permute.xlu0 %533
        %537 = vset.pattern.permute.xlu0 0
        %538 = vperm.xlu0 %537, %v388
        %v539 = vpop.permute.xlu0 %538
        %542 = vset.pattern.permute.xlu0 0
        %543 = vperm.xlu0 %542, %v389
        %v544 = vpop.permute.xlu0 %543
        %547 = vset.pattern.permute.xlu0 0
        %548 = vperm.xlu0 %547, %v390
        %v549 = vpop.permute.xlu0 %548
        %v583 = vunpack.c.l.b16 %v325
        %v584 = vunpack.c.l.b16 %v326
        %v585 = vunpack.c.l.b16 %v327
        %v586 = vunpack.c.l.b16 %v328
        %v587 = vunpack.c.l.b16 %v329
        %v588 = vunpack.c.l.b16 %v330
        %v589 = vunpack.c.l.b16 %v331
        %v590 = vunpack.c.l.b16 %v332
        %v591 = vunpack.c.l.b16 %v333
        %v592 = vunpack.c.l.b16 %v334
        %v593 = vunpack.c.l.b16 %v335
        %v594 = vunpack.c.l.b16 %v336
        %v595 = vunpack.c.l.b16 %v337
        %v596 = vunpack.c.l.b16 %v338
        %v597 = vunpack.c.l.b16 %v339
        %v598 = vunpack.c.l.b16 %v340
        %v599 = vunpack.c.l.b16 %v341
        %v600 = vunpack.c.l.b16 %v342
        %v601 = vunpack.c.l.b16 %v343
        %v602 = vunpack.c.l.b16 %v344
        %v603 = vunpack.c.l.b16 %v345
        %v604 = vunpack.c.l.b16 %v346
        %v605 = vunpack.c.l.b16 %v347
        %v606 = vunpack.c.l.b16 %v348
        %v607 = vunpack.c.l.b16 %v349
        %v608 = vunpack.c.l.b16 %v350
        %v609 = vunpack.c.l.b16 %v351
        %v610 = vunpack.c.l.b16 %v352
        %v611 = vunpack.c.l.b16 %v353
        %v612 = vunpack.c.l.b16 %v354
        %v613 = vunpack.c.l.b16 %v355
        %v614 = vunpack.c.l.b16 %v356
        %v615 = vpack.c.b16 %v584, %v583
        %v616 = vpack.c.b16 %v586, %v585
        %v617 = vpack.c.b16 %v588, %v587
        %v618 = vpack.c.b16 %v590, %v589
        %v619 = vpack.c.b16 %v592, %v591
        %v620 = vpack.c.b16 %v594, %v593
        %v621 = vpack.c.b16 %v596, %v595
        %v622 = vpack.c.b16 %v598, %v597
        %v623 = vpack.c.b16 %v600, %v599
        %v624 = vpack.c.b16 %v602, %v601
        %v625 = vpack.c.b16 %v604, %v603
        %v626 = vpack.c.b16 %v606, %v605
        %v627 = vpack.c.b16 %v608, %v607
        %v628 = vpack.c.b16 %v610, %v609
        %v629 = vpack.c.b16 %v612, %v611
        %v630 = vpack.c.b16 %v614, %v613
        %v633 = vunpack.c.l.b16 %v357
        %v634 = vunpack.c.l.b16 %v358
        %v635 = vpack.c.b16 %v634, %v633
        %vm637 = vcmask 130048
        %v639 = vsel %vm637, %v615, 0
        %v642 = vsel %vm637, %v616, 0
        %v645 = vsel %vm637, %v617, 0
        %v648 = vsel %vm637, %v618, 0
        %v651 = vsel %vm637, %v619, 0
        %v654 = vsel %vm637, %v620, 0
        %v657 = vsel %vm637, %v621, 0
        %v660 = vsel %vm637, %v622, 0
        %v663 = vsel %vm637, %v623, 0
        %v666 = vsel %vm637, %v624, 0
        %v669 = vsel %vm637, %v625, 0
        %v672 = vsel %vm637, %v626, 0
        %v675 = vsel %vm637, %v627, 0
        %v678 = vsel %vm637, %v628, 0
        %v681 = vsel %vm637, %v629, 0
        %v684 = vsel %vm637, %v630, 0
        %686 = vmatprep.subr.bf16.mxu0 0
        %687 = vmatpush1.bf16.msra.mxu0 0
        %688 = vmatprep.subr.bf16.mxu0 0
        %689 = vmatpush1.bf16.msra.mxu0 0
        %690 = vmatprep.subr.bf16.mxu0 0
        %691 = vmatpush1.bf16.msra.mxu0 0
        %692 = vmatprep.subr.bf16.mxu0 0
        %693 = vmatpush1.bf16.msra.mxu0 0
        %694 = vmatprep.subr.bf16.mxu0 0
        %695 = vmatpush1.bf16.msra.mxu0 0
        %696 = vmatprep.subr.bf16.mxu0 0
        %697 = vmatpush1.bf16.msra.mxu0 0
        %698 = vmatprep.subr.bf16.mxu0 0
        %699 = vmatpush1.bf16.msra.mxu0 0
        %700 = vmatprep.subr.bf16.mxu0 0
        %701 = vmatpush1.bf16.msra.mxu0 %v635
        %702 = vmatprep.subr.bf16.mxu0 0
        %703 = vmatpush2.bf16.msra.mxu0 0
        %704 = vmatprep.subr.bf16.mxu0 0
        %705 = vmatpush2.bf16.msra.mxu0 0
        %706 = vmatprep.subr.bf16.mxu0 0
        %707 = vmatpush2.bf16.msra.mxu0 0
        %708 = vmatprep.subr.bf16.mxu0 0
        %709 = vmatpush2.bf16.msra.mxu0 0
        %710 = vmatprep.subr.bf16.mxu0 0
        %711 = vmatpush2.bf16.msra.mxu0 0
        %712 = vmatprep.subr.bf16.mxu0 0
        %713 = vmatpush2.bf16.msra.mxu0 0
        %714 = vmatprep.subr.bf16.mxu0 0
        %715 = vmatpush2.bf16.msra.mxu0 0
        %716 = vmatprep.subr.bf16.mxu0 0
        %717 = vmatpush2.bf16.msra.mxu0 0
        %718 = vmatprep.mubr.bf16.mxu0 0
        %719 = vmatmul.mubr.bf16.gmra.mxu0 %v639
        %v720 = vpop.f32.mrf.mxu0
        %v721 = vadd.f32 %v394, %v720
        %v722 = vpop.f32.mrf.mxu0
        %v723 = vpop.f32.mrf.mxu0
        %v724 = vadd.f32 %v399, %v723
        %v725 = vpop.f32.mrf.mxu0
        %726 = vmatprep.mubr.bf16.mxu0 0
        %727 = vmatmul.mubr.bf16.gmra.mxu0 %v642
        %v728 = vpop.f32.mrf.mxu0
        %v729 = vadd.f32 %v404, %v728
        %v730 = vpop.f32.mrf.mxu0
        %v731 = vpop.f32.mrf.mxu0
        %v732 = vadd.f32 %v409, %v731
        %v733 = vpop.f32.mrf.mxu0
        %734 = vmatprep.mubr.bf16.mxu0 0
        %735 = vmatmul.mubr.bf16.gmra.mxu0 %v645
        %v736 = vpop.f32.mrf.mxu0
        %v737 = vadd.f32 %v414, %v736
        %v738 = vpop.f32.mrf.mxu0
        %v739 = vpop.f32.mrf.mxu0
        %v740 = vadd.f32 %v419, %v739
        %v741 = vpop.f32.mrf.mxu0
        %742 = vmatprep.mubr.bf16.mxu0 0
        %743 = vmatmul.mubr.bf16.gmra.mxu0 %v648
        %v744 = vpop.f32.mrf.mxu0
        %v745 = vadd.f32 %v424, %v744
        %v746 = vpop.f32.mrf.mxu0
        %v747 = vpop.f32.mrf.mxu0
        %v748 = vadd.f32 %v429, %v747
        %v749 = vpop.f32.mrf.mxu0
        %750 = vmatprep.mubr.bf16.mxu0 0
        %751 = vmatmul.mubr.bf16.gmra.mxu0 %v651
        %v752 = vpop.f32.mrf.mxu0
        %v753 = vadd.f32 %v434, %v752
        %v754 = vpop.f32.mrf.mxu0
        %v755 = vpop.f32.mrf.mxu0
        %v756 = vadd.f32 %v439, %v755
        %v757 = vpop.f32.mrf.mxu0
        %758 = vmatprep.mubr.bf16.mxu0 0
        %759 = vmatmul.mubr.bf16.gmra.mxu0 %v654
        %v760 = vpop.f32.mrf.mxu0
        %v761 = vadd.f32 %v444, %v760
        %v762 = vpop.f32.mrf.mxu0
        %v763 = vpop.f32.mrf.mxu0
        %v764 = vadd.f32 %v449, %v763
        %v765 = vpop.f32.mrf.mxu0
        %766 = vmatprep.mubr.bf16.mxu0 0
        %767 = vmatmul.mubr.bf16.gmra.mxu0 %v657
        %v768 = vpop.f32.mrf.mxu0
        %v769 = vadd.f32 %v454, %v768
        %v770 = vpop.f32.mrf.mxu0
        %v771 = vpop.f32.mrf.mxu0
        %v772 = vadd.f32 %v459, %v771
        %v773 = vpop.f32.mrf.mxu0
        %774 = vmatprep.mubr.bf16.mxu0 0
        %775 = vmatmul.mubr.bf16.gmra.mxu0 %v660
        %v776 = vpop.f32.mrf.mxu0
        %v777 = vadd.f32 %v464, %v776
        %v778 = vpop.f32.mrf.mxu0
        %v779 = vpop.f32.mrf.mxu0
        %v780 = vadd.f32 %v469, %v779
        %v781 = vpop.f32.mrf.mxu0
        %782 = vmatprep.mubr.bf16.mxu0 0
        %783 = vmatmul.mubr.bf16.gmra.mxu0 %v663
        %v784 = vpop.f32.mrf.mxu0
        %v785 = vadd.f32 %v474, %v784
        %v786 = vpop.f32.mrf.mxu0
        %v787 = vpop.f32.mrf.mxu0
        %v788 = vadd.f32 %v479, %v787
        %v789 = vpop.f32.mrf.mxu0
        %790 = vmatprep.mubr.bf16.mxu0 0
        %791 = vmatmul.mubr.bf16.gmra.mxu0 %v666
        %v792 = vpop.f32.mrf.mxu0
        %v793 = vadd.f32 %v484, %v792
        %v794 = vpop.f32.mrf.mxu0
        %v795 = vpop.f32.mrf.mxu0
        %v796 = vadd.f32 %v489, %v795
        %v797 = vpop.f32.mrf.mxu0
        %798 = vmatprep.mubr.bf16.mxu0 0
        %799 = vmatmul.mubr.bf16.gmra.mxu0 %v669
        %v800 = vpop.f32.mrf.mxu0
        %v801 = vadd.f32 %v494, %v800
        %v802 = vpop.f32.mrf.mxu0
        %v803 = vpop.f32.mrf.mxu0
        %v804 = vadd.f32 %v499, %v803
        %v805 = vpop.f32.mrf.mxu0
        %806 = vmatprep.mubr.bf16.mxu0 0
        %807 = vmatmul.mubr.bf16.gmra.mxu0 %v672
        %v808 = vpop.f32.mrf.mxu0
        %v809 = vadd.f32 %v504, %v808
        %v810 = vpop.f32.mrf.mxu0
        %v811 = vpop.f32.mrf.mxu0
        %v812 = vadd.f32 %v509, %v811
        %v813 = vpop.f32.mrf.mxu0
        %814 = vmatprep.mubr.bf16.mxu0 0
        %815 = vmatmul.mubr.bf16.gmra.mxu0 %v675
        %v816 = vpop.f32.mrf.mxu0
        %v817 = vadd.f32 %v514, %v816
        %v818 = vpop.f32.mrf.mxu0
        %v819 = vpop.f32.mrf.mxu0
        %v820 = vadd.f32 %v519, %v819
        %v821 = vpop.f32.mrf.mxu0
        %822 = vmatprep.mubr.bf16.mxu0 0
        %823 = vmatmul.mubr.bf16.gmra.mxu0 %v678
        %v824 = vpop.f32.mrf.mxu0
        %v825 = vadd.f32 %v524, %v824
        %v826 = vpop.f32.mrf.mxu0
        %v827 = vpop.f32.mrf.mxu0
        %v828 = vadd.f32 %v529, %v827
        %v829 = vpop.f32.mrf.mxu0
        %830 = vmatprep.mubr.bf16.mxu0 0
        %831 = vmatmul.mubr.bf16.gmra.mxu0 %v681
        %v832 = vpop.f32.mrf.mxu0
        %v833 = vadd.f32 %v534, %v832
        %v834 = vpop.f32.mrf.mxu0
        %v835 = vpop.f32.mrf.mxu0
        %v836 = vadd.f32 %v539, %v835
        %v837 = vpop.f32.mrf.mxu0
        %838 = vmatprep.mubr.bf16.mxu0 0
        %839 = vmatmul.mubr.bf16.gmra.mxu0 %v684
        %v840 = vpop.f32.mrf.mxu0
        %v841 = vadd.f32 %v544, %v840
        %v842 = vpop.f32.mrf.mxu0
        %v843 = vpop.f32.mrf.mxu0
        %v844 = vadd.f32 %v549, %v843
        %v845 = vpop.f32.mrf.mxu0
        %846 = vdwg.mxu0
        %v847 = vmax.f32 %v721, 0.0
        %v848 = vmax.f32 %v724, 0.0
        %v849 = vmax.f32 %v729, 0.0
        %v850 = vmax.f32 %v732, 0.0
        %v851 = vmax.f32 %v737, 0.0
        %v852 = vmax.f32 %v740, 0.0
        %v853 = vmax.f32 %v745, 0.0
        %v854 = vmax.f32 %v748, 0.0
        %v855 = vmax.f32 %v753, 0.0
        %v856 = vmax.f32 %v756, 0.0
        %v857 = vmax.f32 %v761, 0.0
        %v858 = vmax.f32 %v764, 0.0
        %v859 = vmax.f32 %v769, 0.0
        %v860 = vmax.f32 %v772, 0.0
        %v861 = vmax.f32 %v777, 0.0
        %v862 = vmax.f32 %v780, 0.0
        %v863 = vmax.f32 %v785, 0.0
        %v864 = vmax.f32 %v788, 0.0
        %v865 = vmax.f32 %v793, 0.0
        %v866 = vmax.f32 %v796, 0.0
        %v867 = vmax.f32 %v801, 0.0
        %v868 = vmax.f32 %v804, 0.0
        %v869 = vmax.f32 %v809, 0.0
        %v870 = vmax.f32 %v812, 0.0
        %v871 = vmax.f32 %v817, 0.0
        %v872 = vmax.f32 %v820, 0.0
        %v873 = vmax.f32 %v825, 0.0
        %v874 = vmax.f32 %v828, 0.0
        %v875 = vmax.f32 %v833, 0.0
        %v876 = vmax.f32 %v836, 0.0
        %v877 = vmax.f32 %v841, 0.0
        %v878 = vmax.f32 %v844, 0.0
        %v879 = vld [vmem:[%s3] sm:$0xff]
        %v880 = vld [vmem:[%s3 + $0x8] sm:$0xff]
        %v881 = vld [vmem:[%s3 + $0x10] sm:$0xff]
        %v882 = vld [vmem:[%s3 + $0x18] sm:$0xff]
        %v883 = vld [vmem:[%s3 + $0x20] sm:$0xff]
        %v884 = vld [vmem:[%s3 + $0x28] sm:$0xff]
        %v885 = vld [vmem:[%s3 + $0x30] sm:$0xff]
        %v886 = vld [vmem:[%s3 + $0x38] sm:$0xff]
        %v887 = vld [vmem:[%s3 + $0x40] sm:$0xff]
        %v888 = vld [vmem:[%s3 + $0x48] sm:$0xff]
        %v889 = vld [vmem:[%s3 + $0x50] sm:$0xff]
        %v890 = vld [vmem:[%s3 + $0x58] sm:$0xff]
        %v891 = vld [vmem:[%s3 + $0x60] sm:$0xff]
        %v892 = vld [vmem:[%s3 + $0x68] sm:$0xff]
        %v893 = vld [vmem:[%s3 + $0x70] sm:$0xff]
        %v894 = vld [vmem:[%s3 + $0x78] sm:$0xff]
        %v895 = vld [vmem:[%s3 + $0x80] sm:$0xff]
        %v896 = vld [vmem:[%s3 + $0x88] sm:$0xff]
        %v897 = vld [vmem:[%s3 + $0x90] sm:$0xff]
        %v898 = vld [vmem:[%s3 + $0x98] sm:$0xff]
        %v899 = vld [vmem:[%s3 + $0xa0] sm:$0xff]
        %v900 = vld [vmem:[%s3 + $0xa8] sm:$0xff]
        %v901 = vld [vmem:[%s3 + $0xb0] sm:$0xff]
        %v902 = vld [vmem:[%s3 + $0xb8] sm:$0xff]
        %v903 = vld [vmem:[%s3 + $0xc0] sm:$0xff]
        %v904 = vld [vmem:[%s3 + $0xc8] sm:$0xff]
        %v905 = vld [vmem:[%s3 + $0xd0] sm:$0xff]
        %v906 = vld [vmem:[%s3 + $0xd8] sm:$0xff]
        %v907 = vld [vmem:[%s3 + $0xe0] sm:$0xff]
        %v908 = vld [vmem:[%s3 + $0xe8] sm:$0xff]
        %v909 = vld [vmem:[%s3 + $0xf0] sm:$0xff]
        %v910 = vld [vmem:[%s3 + $0xf8] sm:$0xff]
        %v911 = vpack.c.bf16 %v848, %v847
        %v912 = vpack.c.bf16 %v850, %v849
        %v913 = vpack.c.bf16 %v852, %v851
        %v914 = vpack.c.bf16 %v854, %v853
        %v915 = vpack.c.bf16 %v856, %v855
        %v916 = vpack.c.bf16 %v858, %v857
        %v917 = vpack.c.bf16 %v860, %v859
        %v918 = vpack.c.bf16 %v862, %v861
        %v919 = vpack.c.bf16 %v864, %v863
        %v920 = vpack.c.bf16 %v866, %v865
        %v921 = vpack.c.bf16 %v868, %v867
        %v922 = vpack.c.bf16 %v870, %v869
        %v923 = vpack.c.bf16 %v872, %v871
        %v924 = vpack.c.bf16 %v874, %v873
        %v925 = vpack.c.bf16 %v876, %v875
        %v926 = vpack.c.bf16 %v878, %v877
        %v927 = vld [vmem:[%s4] sm:$0xff]
        %v928 = vld [vmem:[%s4 + $0x8] sm:$0xff]
        %v929 = vld [vmem:[%s4 + $0x10] sm:$0xff]
        %v930 = vld [vmem:[%s4 + $0x18] sm:$0xff]
        %v931 = vld [vmem:[%s4 + $0x20] sm:$0xff]
        %v932 = vld [vmem:[%s4 + $0x28] sm:$0xff]
        %v933 = vld [vmem:[%s4 + $0x30] sm:$0xff]
        %v934 = vld [vmem:[%s4 + $0x38] sm:$0xff]
        %v935 = vld [vmem:[%s4 + $0x40] sm:$0xff]
        %v936 = vld [vmem:[%s4 + $0x48] sm:$0xff]
        %v937 = vld [vmem:[%s4 + $0x50] sm:$0xff]
        %v938 = vld [vmem:[%s4 + $0x58] sm:$0xff]
        %v939 = vld [vmem:[%s4 + $0x60] sm:$0xff]
        %v940 = vld [vmem:[%s4 + $0x68] sm:$0xff]
        %v941 = vld [vmem:[%s4 + $0x70] sm:$0xff]
        %v942 = vld [vmem:[%s4 + $0x78] sm:$0xff]
        %v943 = vld [vmem:[%s4 + $0x80] sm:$0xff]
        %v944 = vld [vmem:[%s4 + $0x88] sm:$0xff]
        %v945 = vld [vmem:[%s4 + $0x90] sm:$0xff]
        %v946 = vld [vmem:[%s4 + $0x98] sm:$0xff]
        %v947 = vld [vmem:[%s4 + $0xa0] sm:$0xff]
        %v948 = vld [vmem:[%s4 + $0xa8] sm:$0xff]
        %v949 = vld [vmem:[%s4 + $0xb0] sm:$0xff]
        %v950 = vld [vmem:[%s4 + $0xb8] sm:$0xff]
        %v951 = vld [vmem:[%s4 + $0xc0] sm:$0xff]
        %v952 = vld [vmem:[%s4 + $0xc8] sm:$0xff]
        %v953 = vld [vmem:[%s4 + $0xd0] sm:$0xff]
        %v954 = vld [vmem:[%s4 + $0xd8] sm:$0xff]
        %v955 = vld [vmem:[%s4 + $0xe0] sm:$0xff]
        %v956 = vld [vmem:[%s4 + $0xe8] sm:$0xff]
        %v957 = vld [vmem:[%s4 + $0xf0] sm:$0xff]
        %v958 = vld [vmem:[%s4 + $0xf8] sm:$0xff]
        %960 = vset.pattern.permute.xlu0 0
        %961 = vperm.xlu0 %960, %v927
        %v962 = vpop.permute.xlu0 %961
        %965 = vset.pattern.permute.xlu0 0
        %966 = vperm.xlu0 %965, %v928
        %v967 = vpop.permute.xlu0 %966
        %970 = vset.pattern.permute.xlu0 0
        %971 = vperm.xlu0 %970, %v929
        %v972 = vpop.permute.xlu0 %971
        %975 = vset.pattern.permute.xlu0 0
        %976 = vperm.xlu0 %975, %v930
        %v977 = vpop.permute.xlu0 %976
        %980 = vset.pattern.permute.xlu0 0
        %981 = vperm.xlu0 %980, %v931
        %v982 = vpop.permute.xlu0 %981
        %985 = vset.pattern.permute.xlu0 0
        %986 = vperm.xlu0 %985, %v932
        %v987 = vpop.permute.xlu0 %986
        %990 = vset.pattern.permute.xlu0 0
        %991 = vperm.xlu0 %990, %v933
        %v992 = vpop.permute.xlu0 %991
        %995 = vset.pattern.permute.xlu0 0
        %996 = vperm.xlu0 %995, %v934
        %v997 = vpop.permute.xlu0 %996
        %1000 = vset.pattern.permute.xlu0 0
        %1001 = vperm.xlu0 %1000, %v935
        %v1002 = vpop.permute.xlu0 %1001
        %1005 = vset.pattern.permute.xlu0 0
        %1006 = vperm.xlu0 %1005, %v936
        %v1007 = vpop.permute.xlu0 %1006
        %1010 = vset.pattern.permute.xlu0 0
        %1011 = vperm.xlu0 %1010, %v937
        %v1012 = vpop.permute.xlu0 %1011
        %1015 = vset.pattern.permute.xlu0 0
        %1016 = vperm.xlu0 %1015, %v938
        %v1017 = vpop.permute.xlu0 %1016
        %1020 = vset.pattern.permute.xlu0 0
        %1021 = vperm.xlu0 %1020, %v939
        %v1022 = vpop.permute.xlu0 %1021
        %1025 = vset.pattern.permute.xlu0 0
        %1026 = vperm.xlu0 %1025, %v940
        %v1027 = vpop.permute.xlu0 %1026
        %1030 = vset.pattern.permute.xlu0 0
        %1031 = vperm.xlu0 %1030, %v941
        %v1032 = vpop.permute.xlu0 %1031
        %1035 = vset.pattern.permute.xlu0 0
        %1036 = vperm.xlu0 %1035, %v942
        %v1037 = vpop.permute.xlu0 %1036
        %1040 = vset.pattern.permute.xlu0 0
        %1041 = vperm.xlu0 %1040, %v943
        %v1042 = vpop.permute.xlu0 %1041
        %1045 = vset.pattern.permute.xlu0 0
        %1046 = vperm.xlu0 %1045, %v944
        %v1047 = vpop.permute.xlu0 %1046
        %1050 = vset.pattern.permute.xlu0 0
        %1051 = vperm.xlu0 %1050, %v945
        %v1052 = vpop.permute.xlu0 %1051
        %1055 = vset.pattern.permute.xlu0 0
        %1056 = vperm.xlu0 %1055, %v946
        %v1057 = vpop.permute.xlu0 %1056
        %1060 = vset.pattern.permute.xlu0 0
        %1061 = vperm.xlu0 %1060, %v947
        %v1062 = vpop.permute.xlu0 %1061
        %1065 = vset.pattern.permute.xlu0 0
        %1066 = vperm.xlu0 %1065, %v948
        %v1067 = vpop.permute.xlu0 %1066
        %1070 = vset.pattern.permute.xlu0 0
        %1071 = vperm.xlu0 %1070, %v949
        %v1072 = vpop.permute.xlu0 %1071
        %1075 = vset.pattern.permute.xlu0 0
        %1076 = vperm.xlu0 %1075, %v950
        %v1077 = vpop.permute.xlu0 %1076
        %1080 = vset.pattern.permute.xlu0 0
        %1081 = vperm.xlu0 %1080, %v951
        %v1082 = vpop.permute.xlu0 %1081
        %1085 = vset.pattern.permute.xlu0 0
        %1086 = vperm.xlu0 %1085, %v952
        %v1087 = vpop.permute.xlu0 %1086
        %1090 = vset.pattern.permute.xlu0 0
        %1091 = vperm.xlu0 %1090, %v953
        %v1092 = vpop.permute.xlu0 %1091
        %1095 = vset.pattern.permute.xlu0 0
        %1096 = vperm.xlu0 %1095, %v954
        %v1097 = vpop.permute.xlu0 %1096
        %1100 = vset.pattern.permute.xlu0 0
        %1101 = vperm.xlu0 %1100, %v955
        %v1102 = vpop.permute.xlu0 %1101
        %1105 = vset.pattern.permute.xlu0 0
        %1106 = vperm.xlu0 %1105, %v956
        %v1107 = vpop.permute.xlu0 %1106
        %1110 = vset.pattern.permute.xlu0 0
        %1111 = vperm.xlu0 %1110, %v957
        %v1112 = vpop.permute.xlu0 %1111
        %1115 = vset.pattern.permute.xlu0 0
        %1116 = vperm.xlu0 %1115, %v958
        %v1117 = vpop.permute.xlu0 %1116
        %v1151 = vunpack.c.l.b16 %v879
        %v1152 = vunpack.c.h.b16 %v879
        %v1153 = vunpack.c.l.b16 %v880
        %v1154 = vunpack.c.h.b16 %v880
        %v1155 = vunpack.c.l.b16 %v881
        %v1156 = vunpack.c.h.b16 %v881
        %v1157 = vunpack.c.l.b16 %v882
        %v1158 = vunpack.c.h.b16 %v882
        %v1159 = vunpack.c.l.b16 %v883
        %v1160 = vunpack.c.h.b16 %v883
        %v1161 = vunpack.c.l.b16 %v884
        %v1162 = vunpack.c.h.b16 %v884
        %v1163 = vunpack.c.l.b16 %v885
        %v1164 = vunpack.c.h.b16 %v885
        %v1165 = vunpack.c.l.b16 %v886
        %v1166 = vunpack.c.h.b16 %v886
        %v1167 = vunpack.c.l.b16 %v887
        %v1168 = vunpack.c.h.b16 %v887
        %v1169 = vunpack.c.l.b16 %v888
        %v1170 = vunpack.c.h.b16 %v888
        %v1171 = vunpack.c.l.b16 %v889
        %v1172 = vunpack.c.h.b16 %v889
        %v1173 = vunpack.c.l.b16 %v890
        %v1174 = vunpack.c.h.b16 %v890
        %v1175 = vunpack.c.l.b16 %v891
        %v1176 = vunpack.c.h.b16 %v891
        %v1177 = vunpack.c.l.b16 %v892
        %v1178 = vunpack.c.h.b16 %v892
        %v1179 = vunpack.c.l.b16 %v893
        %v1180 = vunpack.c.h.b16 %v893
        %v1181 = vunpack.c.l.b16 %v894
        %v1182 = vunpack.c.h.b16 %v894
        %v1183 = vunpack.c.l.b16 %v895
        %v1184 = vunpack.c.h.b16 %v895
        %v1185 = vunpack.c.l.b16 %v896
        %v1186 = vunpack.c.h.b16 %v896
        %v1187 = vunpack.c.l.b16 %v897
        %v1188 = vunpack.c.h.b16 %v897
        %v1189 = vunpack.c.l.b16 %v898
        %v1190 = vunpack.c.h.b16 %v898
        %v1191 = vunpack.c.l.b16 %v899
        %v1192 = vunpack.c.h.b16 %v899
        %v1193 = vunpack.c.l.b16 %v900
        %v1194 = vunpack.c.h.b16 %v900
        %v1195 = vunpack.c.l.b16 %v901
        %v1196 = vunpack.c.h.b16 %v901
        %v1197 = vunpack.c.l.b16 %v902
        %v1198 = vunpack.c.h.b16 %v902
        %v1199 = vunpack.c.l.b16 %v903
        %v1200 = vunpack.c.h.b16 %v903
        %v1201 = vunpack.c.l.b16 %v904
        %v1202 = vunpack.c.h.b16 %v904
        %v1203 = vunpack.c.l.b16 %v905
        %v1204 = vunpack.c.h.b16 %v905
        %v1205 = vunpack.c.l.b16 %v906
        %v1206 = vunpack.c.h.b16 %v906
        %v1207 = vunpack.c.l.b16 %v907
        %v1208 = vunpack.c.h.b16 %v907
        %v1209 = vunpack.c.l.b16 %v908
        %v1210 = vunpack.c.h.b16 %v908
        %v1211 = vunpack.c.l.b16 %v909
        %v1212 = vunpack.c.h.b16 %v909
        %v1213 = vunpack.c.l.b16 %v910
        %v1214 = vunpack.c.h.b16 %v910
        %v1215 = vpack.c.b16 %v1153, %v1151
        %v1216 = vpack.c.b16 %v1154, %v1152
        %v1217 = vpack.c.b16 %v1157, %v1155
        %v1218 = vpack.c.b16 %v1158, %v1156
        %v1219 = vpack.c.b16 %v1161, %v1159
        %v1220 = vpack.c.b16 %v1162, %v1160
        %v1221 = vpack.c.b16 %v1165, %v1163
        %v1222 = vpack.c.b16 %v1166, %v1164
        %v1223 = vpack.c.b16 %v1169, %v1167
        %v1224 = vpack.c.b16 %v1170, %v1168
        %v1225 = vpack.c.b16 %v1173, %v1171
        %v1226 = vpack.c.b16 %v1174, %v1172
        %v1227 = vpack.c.b16 %v1177, %v1175
        %v1228 = vpack.c.b16 %v1178, %v1176
        %v1229 = vpack.c.b16 %v1181, %v1179
        %v1230 = vpack.c.b16 %v1182, %v1180
        %v1231 = vpack.c.b16 %v1185, %v1183
        %v1232 = vpack.c.b16 %v1186, %v1184
        %v1233 = vpack.c.b16 %v1189, %v1187
        %v1234 = vpack.c.b16 %v1190, %v1188
        %v1235 = vpack.c.b16 %v1193, %v1191
        %v1236 = vpack.c.b16 %v1194, %v1192
        %v1237 = vpack.c.b16 %v1197, %v1195
        %v1238 = vpack.c.b16 %v1198, %v1196
        %v1239 = vpack.c.b16 %v1201, %v1199
        %v1240 = vpack.c.b16 %v1202, %v1200
        %v1241 = vpack.c.b16 %v1205, %v1203
        %v1242 = vpack.c.b16 %v1206, %v1204
        %v1243 = vpack.c.b16 %v1209, %v1207
        %v1244 = vpack.c.b16 %v1210, %v1208
        %v1245 = vpack.c.b16 %v1213, %v1211
        %v1246 = vpack.c.b16 %v1214, %v1212
        %1279 = vmatprep.subr.bf16.mxu0 0
        %1280 = vmatpush1.bf16.msra.mxu0 %v918
        %1281 = vmatprep.subr.bf16.mxu0 0
        %1282 = vmatpush1.bf16.msra.mxu0 %v917
        %1283 = vmatprep.subr.bf16.mxu0 0
        %1284 = vmatpush1.bf16.msra.mxu0 %v916
        %1285 = vmatprep.subr.bf16.mxu0 0
        %1286 = vmatpush1.bf16.msra.mxu0 %v915
        %1287 = vmatprep.subr.bf16.mxu0 0
        %1288 = vmatpush1.bf16.msra.mxu0 %v914
        %1289 = vmatprep.subr.bf16.mxu0 0
        %1290 = vmatpush1.bf16.msra.mxu0 %v913
        %1291 = vmatprep.subr.bf16.mxu0 0
        %1292 = vmatpush1.bf16.msra.mxu0 %v912
        %1293 = vmatprep.subr.bf16.mxu0 0
        %1294 = vmatpush1.bf16.msra.mxu0 %v911
        %1295 = vmatprep.subr.bf16.mxu0 0
        %1296 = vmatpush2.bf16.msra.mxu0 %v926
        %1297 = vmatprep.subr.bf16.mxu0 0
        %1298 = vmatpush2.bf16.msra.mxu0 %v925
        %1299 = vmatprep.subr.bf16.mxu0 0
        %1300 = vmatpush2.bf16.msra.mxu0 %v924
        %1301 = vmatprep.subr.bf16.mxu0 0
        %1302 = vmatpush2.bf16.msra.mxu0 %v923
        %1303 = vmatprep.subr.bf16.mxu0 0
        %1304 = vmatpush2.bf16.msra.mxu0 %v922
        %1305 = vmatprep.subr.bf16.mxu0 0
        %1306 = vmatpush2.bf16.msra.mxu0 %v921
        %1307 = vmatprep.subr.bf16.mxu0 0
        %1308 = vmatpush2.bf16.msra.mxu0 %v920
        %1309 = vmatprep.subr.bf16.mxu0 0
        %1310 = vmatpush2.bf16.msra.mxu0 %v919
        %1311 = vmatprep.mubr.bf16.mxu0 %v1216
        %1312 = vmatmul.mubr.bf16.gmra.mxu0 %v1215
        %v1313 = vpop.f32.mrf.mxu0
        %v1314 = vadd.f32 %v962, %v1313
        %v1315 = vpop.f32.mrf.mxu0
        %v1316 = vpop.f32.mrf.mxu0
        %v1317 = vadd.f32 %v967, %v1316
        %v1318 = vpop.f32.mrf.mxu0
        %1319 = vmatprep.mubr.bf16.mxu0 %v1218
        %1320 = vmatmul.mubr.bf16.gmra.mxu0 %v1217
        %v1321 = vpop.f32.mrf.mxu0
        %v1322 = vadd.f32 %v972, %v1321
        %v1323 = vpop.f32.mrf.mxu0
        %v1324 = vpop.f32.mrf.mxu0
        %v1325 = vadd.f32 %v977, %v1324
        %v1326 = vpop.f32.mrf.mxu0
        %1327 = vmatprep.mubr.bf16.mxu0 %v1220
        %1328 = vmatmul.mubr.bf16.gmra.mxu0 %v1219
        %v1329 = vpop.f32.mrf.mxu0
        %v1330 = vadd.f32 %v982, %v1329
        %v1331 = vpop.f32.mrf.mxu0
        %v1332 = vpop.f32.mrf.mxu0
        %v1333 = vadd.f32 %v987, %v1332
        %v1334 = vpop.f32.mrf.mxu0
        %1335 = vmatprep.mubr.bf16.mxu0 %v1222
        %1336 = vmatmul.mubr.bf16.gmra.mxu0 %v1221
        %v1337 = vpop.f32.mrf.mxu0
        %v1338 = vadd.f32 %v992, %v1337
        %v1339 = vpop.f32.mrf.mxu0
        %v1340 = vpop.f32.mrf.mxu0
        %v1341 = vadd.f32 %v997, %v1340
        %v1342 = vpop.f32.mrf.mxu0
        %1343 = vmatprep.mubr.bf16.mxu0 %v1224
        %1344 = vmatmul.mubr.bf16.gmra.mxu0 %v1223
        %v1345 = vpop.f32.mrf.mxu0
        %v1346 = vadd.f32 %v1002, %v1345
        %v1347 = vpop.f32.mrf.mxu0
        %v1348 = vpop.f32.mrf.mxu0
        %v1349 = vadd.f32 %v1007, %v1348
        %v1350 = vpop.f32.mrf.mxu0
        %1351 = vmatprep.mubr.bf16.mxu0 %v1226
        %1352 = vmatmul.mubr.bf16.gmra.mxu0 %v1225
        %v1353 = vpop.f32.mrf.mxu0
        %v1354 = vadd.f32 %v1012, %v1353
        %v1355 = vpop.f32.mrf.mxu0
        %v1356 = vpop.f32.mrf.mxu0
        %v1357 = vadd.f32 %v1017, %v1356
        %v1358 = vpop.f32.mrf.mxu0
        %1359 = vmatprep.mubr.bf16.mxu0 %v1228
        %1360 = vmatmul.mubr.bf16.gmra.mxu0 %v1227
        %v1361 = vpop.f32.mrf.mxu0
        %v1362 = vadd.f32 %v1022, %v1361
        %v1363 = vpop.f32.mrf.mxu0
        %v1364 = vpop.f32.mrf.mxu0
        %v1365 = vadd.f32 %v1027, %v1364
        %v1366 = vpop.f32.mrf.mxu0
        %1367 = vmatprep.mubr.bf16.mxu0 %v1230
        %1368 = vmatmul.mubr.bf16.gmra.mxu0 %v1229
        %v1369 = vpop.f32.mrf.mxu0
        %v1370 = vadd.f32 %v1032, %v1369
        %v1371 = vpop.f32.mrf.mxu0
        %v1372 = vpop.f32.mrf.mxu0
        %v1373 = vadd.f32 %v1037, %v1372
        %v1374 = vpop.f32.mrf.mxu0
        %1375 = vmatprep.mubr.bf16.mxu0 %v1232
        %1376 = vmatmul.mubr.bf16.gmra.mxu0 %v1231
        %v1377 = vpop.f32.mrf.mxu0
        %v1378 = vadd.f32 %v1042, %v1377
        %v1379 = vpop.f32.mrf.mxu0
        %v1380 = vpop.f32.mrf.mxu0
        %v1381 = vadd.f32 %v1047, %v1380
        %v1382 = vpop.f32.mrf.mxu0
        %1383 = vmatprep.mubr.bf16.mxu0 %v1234
        %1384 = vmatmul.mubr.bf16.gmra.mxu0 %v1233
        %v1385 = vpop.f32.mrf.mxu0
        %v1386 = vadd.f32 %v1052, %v1385
        %v1387 = vpop.f32.mrf.mxu0
        %v1388 = vpop.f32.mrf.mxu0
        %v1389 = vadd.f32 %v1057, %v1388
        %v1390 = vpop.f32.mrf.mxu0
        %1391 = vmatprep.mubr.bf16.mxu0 %v1236
        %1392 = vmatmul.mubr.bf16.gmra.mxu0 %v1235
        %v1393 = vpop.f32.mrf.mxu0
        %v1394 = vadd.f32 %v1062, %v1393
        %v1395 = vpop.f32.mrf.mxu0
        %v1396 = vpop.f32.mrf.mxu0
        %v1397 = vadd.f32 %v1067, %v1396
        %v1398 = vpop.f32.mrf.mxu0
        %1399 = vmatprep.mubr.bf16.mxu0 %v1238
        %1400 = vmatmul.mubr.bf16.gmra.mxu0 %v1237
        %v1401 = vpop.f32.mrf.mxu0
        %v1402 = vadd.f32 %v1072, %v1401
        %v1403 = vpop.f32.mrf.mxu0
        %v1404 = vpop.f32.mrf.mxu0
        %v1405 = vadd.f32 %v1077, %v1404
        %v1406 = vpop.f32.mrf.mxu0
        %1407 = vmatprep.mubr.bf16.mxu0 %v1240
        %1408 = vmatmul.mubr.bf16.gmra.mxu0 %v1239
        %v1409 = vpop.f32.mrf.mxu0
        %v1410 = vadd.f32 %v1082, %v1409
        %v1411 = vpop.f32.mrf.mxu0
        %v1412 = vpop.f32.mrf.mxu0
        %v1413 = vadd.f32 %v1087, %v1412
        %v1414 = vpop.f32.mrf.mxu0
        %1415 = vmatprep.mubr.bf16.mxu0 %v1242
        %1416 = vmatmul.mubr.bf16.gmra.mxu0 %v1241
        %v1417 = vpop.f32.mrf.mxu0
        %v1418 = vadd.f32 %v1092, %v1417
        %v1419 = vpop.f32.mrf.mxu0
        %v1420 = vpop.f32.mrf.mxu0
        %v1421 = vadd.f32 %v1097, %v1420
        %v1422 = vpop.f32.mrf.mxu0
        %1423 = vmatprep.mubr.bf16.mxu0 %v1244
        %1424 = vmatmul.mubr.bf16.gmra.mxu0 %v1243
        %v1425 = vpop.f32.mrf.mxu0
        %v1426 = vadd.f32 %v1102, %v1425
        %v1427 = vpop.f32.mrf.mxu0
        %v1428 = vpop.f32.mrf.mxu0
        %v1429 = vadd.f32 %v1107, %v1428
        %v1430 = vpop.f32.mrf.mxu0
        %1431 = vmatprep.mubr.bf16.mxu0 %v1246
        %1432 = vmatmul.mubr.bf16.gmra.mxu0 %v1245
        %v1433 = vpop.f32.mrf.mxu0
        %v1434 = vadd.f32 %v1112, %v1433
        %v1435 = vpop.f32.mrf.mxu0
        %v1436 = vpop.f32.mrf.mxu0
        %v1437 = vadd.f32 %v1117, %v1436
        %v1438 = vpop.f32.mrf.mxu0
        %1439 = vdwg.mxu0
        %v1440 = vmax.f32 %v1314, 0.0
        %v1441 = vmax.f32 %v1317, 0.0
        %v1442 = vmax.f32 %v1322, 0.0
        %v1443 = vmax.f32 %v1325, 0.0
        %v1444 = vmax.f32 %v1330, 0.0
        %v1445 = vmax.f32 %v1333, 0.0
        %v1446 = vmax.f32 %v1338, 0.0
        %v1447 = vmax.f32 %v1341, 0.0
        %v1448 = vmax.f32 %v1346, 0.0
        %v1449 = vmax.f32 %v1349, 0.0
        %v1450 = vmax.f32 %v1354, 0.0
        %v1451 = vmax.f32 %v1357, 0.0
        %v1452 = vmax.f32 %v1362, 0.0
        %v1453 = vmax.f32 %v1365, 0.0
        %v1454 = vmax.f32 %v1370, 0.0
        %v1455 = vmax.f32 %v1373, 0.0
        %v1456 = vmax.f32 %v1378, 0.0
        %v1457 = vmax.f32 %v1381, 0.0
        %v1458 = vmax.f32 %v1386, 0.0
        %v1459 = vmax.f32 %v1389, 0.0
        %v1460 = vmax.f32 %v1394, 0.0
        %v1461 = vmax.f32 %v1397, 0.0
        %v1462 = vmax.f32 %v1402, 0.0
        %v1463 = vmax.f32 %v1405, 0.0
        %v1464 = vmax.f32 %v1410, 0.0
        %v1465 = vmax.f32 %v1413, 0.0
        %v1466 = vmax.f32 %v1418, 0.0
        %v1467 = vmax.f32 %v1421, 0.0
        %v1468 = vmax.f32 %v1426, 0.0
        %v1469 = vmax.f32 %v1429, 0.0
        %v1470 = vmax.f32 %v1434, 0.0
        %v1471 = vmax.f32 %v1437, 0.0
        %v1472 = vld [vmem:[%s5] sm:$0xff]
        %v1473 = vld [vmem:[%s5 + $0x8] sm:$0xff]
        %v1474 = vld [vmem:[%s5 + $0x10] sm:$0xff]
        %v1475 = vld [vmem:[%s5 + $0x18] sm:$0xff]
        %v1476 = vld [vmem:[%s5 + $0x20] sm:$0xff]
        %v1477 = vld [vmem:[%s5 + $0x28] sm:$0xff]
        %v1478 = vld [vmem:[%s5 + $0x30] sm:$0xff]
        %v1479 = vld [vmem:[%s5 + $0x38] sm:$0xff]
        %v1480 = vld [vmem:[%s5 + $0x40] sm:$0xff]
        %v1481 = vld [vmem:[%s5 + $0x48] sm:$0xff]
        %v1482 = vld [vmem:[%s5 + $0x50] sm:$0xff]
        %v1483 = vld [vmem:[%s5 + $0x58] sm:$0xff]
        %v1484 = vld [vmem:[%s5 + $0x60] sm:$0xff]
        %v1485 = vld [vmem:[%s5 + $0x68] sm:$0xff]
        %v1486 = vld [vmem:[%s5 + $0x70] sm:$0xff]
        %v1487 = vld [vmem:[%s5 + $0x78] sm:$0xff]
        %v1488 = vld [vmem:[%s5 + $0x80] sm:$0xff]
        %v1489 = vld [vmem:[%s5 + $0x88] sm:$0xff]
        %v1490 = vld [vmem:[%s5 + $0x90] sm:$0xff]
        %v1491 = vld [vmem:[%s5 + $0x98] sm:$0xff]
        %v1492 = vld [vmem:[%s5 + $0xa0] sm:$0xff]
        %v1493 = vld [vmem:[%s5 + $0xa8] sm:$0xff]
        %v1494 = vld [vmem:[%s5 + $0xb0] sm:$0xff]
        %v1495 = vld [vmem:[%s5 + $0xb8] sm:$0xff]
        %v1496 = vld [vmem:[%s5 + $0xc0] sm:$0xff]
        %v1497 = vld [vmem:[%s5 + $0xc8] sm:$0xff]
        %v1498 = vld [vmem:[%s5 + $0xd0] sm:$0xff]
        %v1499 = vld [vmem:[%s5 + $0xd8] sm:$0xff]
        %v1500 = vld [vmem:[%s5 + $0xe0] sm:$0xff]
        %v1501 = vld [vmem:[%s5 + $0xe8] sm:$0xff]
        %v1502 = vld [vmem:[%s5 + $0xf0] sm:$0xff]
        %v1503 = vld [vmem:[%s5 + $0xf8] sm:$0xff]
        %1505 = vset.pattern.permute.xlu0 0
        %1506 = vperm.xlu0 %1505, %v1472
        %v1507 = vpop.permute.xlu0 %1506
        %1510 = vset.pattern.permute.xlu0 0
        %1511 = vperm.xlu0 %1510, %v1473
        %v1512 = vpop.permute.xlu0 %1511
        %1515 = vset.pattern.permute.xlu0 0
        %1516 = vperm.xlu0 %1515, %v1474
        %v1517 = vpop.permute.xlu0 %1516
        %1520 = vset.pattern.permute.xlu0 0
        %1521 = vperm.xlu0 %1520, %v1475
        %v1522 = vpop.permute.xlu0 %1521
        %1525 = vset.pattern.permute.xlu0 0
        %1526 = vperm.xlu0 %1525, %v1476
        %v1527 = vpop.permute.xlu0 %1526
        %1530 = vset.pattern.permute.xlu0 0
        %1531 = vperm.xlu0 %1530, %v1477
        %v1532 = vpop.permute.xlu0 %1531
        %1535 = vset.pattern.permute.xlu0 0
        %1536 = vperm.xlu0 %1535, %v1478
        %v1537 = vpop.permute.xlu0 %1536
        %1540 = vset.pattern.permute.xlu0 0
        %1541 = vperm.xlu0 %1540, %v1479
        %v1542 = vpop.permute.xlu0 %1541
        %1545 = vset.pattern.permute.xlu0 0
        %1546 = vperm.xlu0 %1545, %v1480
        %v1547 = vpop.permute.xlu0 %1546
        %1550 = vset.pattern.permute.xlu0 0
        %1551 = vperm.xlu0 %1550, %v1481
        %v1552 = vpop.permute.xlu0 %1551
        %1555 = vset.pattern.permute.xlu0 0
        %1556 = vperm.xlu0 %1555, %v1482
        %v1557 = vpop.permute.xlu0 %1556
        %1560 = vset.pattern.permute.xlu0 0
        %1561 = vperm.xlu0 %1560, %v1483
        %v1562 = vpop.permute.xlu0 %1561
        %1565 = vset.pattern.permute.xlu0 0
        %1566 = vperm.xlu0 %1565, %v1484
        %v1567 = vpop.permute.xlu0 %1566
        %1570 = vset.pattern.permute.xlu0 0
        %1571 = vperm.xlu0 %1570, %v1485
        %v1572 = vpop.permute.xlu0 %1571
        %1575 = vset.pattern.permute.xlu0 0
        %1576 = vperm.xlu0 %1575, %v1486
        %v1577 = vpop.permute.xlu0 %1576
        %1580 = vset.pattern.permute.xlu0 0
        %1581 = vperm.xlu0 %1580, %v1487
        %v1582 = vpop.permute.xlu0 %1581
        %1585 = vset.pattern.permute.xlu0 0
        %1586 = vperm.xlu0 %1585, %v1488
        %v1587 = vpop.permute.xlu0 %1586
        %1590 = vset.pattern.permute.xlu0 0
        %1591 = vperm.xlu0 %1590, %v1489
        %v1592 = vpop.permute.xlu0 %1591
        %1595 = vset.pattern.permute.xlu0 0
        %1596 = vperm.xlu0 %1595, %v1490
        %v1597 = vpop.permute.xlu0 %1596
        %1600 = vset.pattern.permute.xlu0 0
        %1601 = vperm.xlu0 %1600, %v1491
        %v1602 = vpop.permute.xlu0 %1601
        %1605 = vset.pattern.permute.xlu0 0
        %1606 = vperm.xlu0 %1605, %v1492
        %v1607 = vpop.permute.xlu0 %1606
        %1610 = vset.pattern.permute.xlu0 0
        %1611 = vperm.xlu0 %1610, %v1493
        %v1612 = vpop.permute.xlu0 %1611
        %1615 = vset.pattern.permute.xlu0 0
        %1616 = vperm.xlu0 %1615, %v1494
        %v1617 = vpop.permute.xlu0 %1616
        %1620 = vset.pattern.permute.xlu0 0
        %1621 = vperm.xlu0 %1620, %v1495
        %v1622 = vpop.permute.xlu0 %1621
        %1625 = vset.pattern.permute.xlu0 0
        %1626 = vperm.xlu0 %1625, %v1496
        %v1627 = vpop.permute.xlu0 %1626
        %1630 = vset.pattern.permute.xlu0 0
        %1631 = vperm.xlu0 %1630, %v1497
        %v1632 = vpop.permute.xlu0 %1631
        %1635 = vset.pattern.permute.xlu0 0
        %1636 = vperm.xlu0 %1635, %v1498
        %v1637 = vpop.permute.xlu0 %1636
        %1640 = vset.pattern.permute.xlu0 0
        %1641 = vperm.xlu0 %1640, %v1499
        %v1642 = vpop.permute.xlu0 %1641
        %1645 = vset.pattern.permute.xlu0 0
        %1646 = vperm.xlu0 %1645, %v1500
        %v1647 = vpop.permute.xlu0 %1646
        %1650 = vset.pattern.permute.xlu0 0
        %1651 = vperm.xlu0 %1650, %v1501
        %v1652 = vpop.permute.xlu0 %1651
        %1655 = vset.pattern.permute.xlu0 0
        %1656 = vperm.xlu0 %1655, %v1502
        %v1657 = vpop.permute.xlu0 %1656
        %1660 = vset.pattern.permute.xlu0 0
        %1661 = vperm.xlu0 %1660, %v1503
        %v1662 = vpop.permute.xlu0 %1661
        %v1664 = vmul.f32 %v1440, %v1507
        %v1665 = vmul.f32 %v1441, %v1512
        %v1666 = vmul.f32 %v1442, %v1517
        %v1667 = vmul.f32 %v1443, %v1522
        %v1668 = vmul.f32 %v1444, %v1527
        %v1669 = vmul.f32 %v1445, %v1532
        %v1670 = vmul.f32 %v1446, %v1537
        %v1671 = vmul.f32 %v1447, %v1542
        %v1672 = vmul.f32 %v1448, %v1547
        %v1673 = vmul.f32 %v1449, %v1552
        %v1674 = vmul.f32 %v1450, %v1557
        %v1675 = vmul.f32 %v1451, %v1562
        %v1676 = vmul.f32 %v1452, %v1567
        %v1677 = vmul.f32 %v1453, %v1572
        %v1678 = vmul.f32 %v1454, %v1577
        %v1679 = vmul.f32 %v1455, %v1582
        %v1680 = vmul.f32 %v1456, %v1587
        %v1681 = vmul.f32 %v1457, %v1592
        %v1682 = vmul.f32 %v1458, %v1597
        %v1683 = vmul.f32 %v1459, %v1602
        %v1684 = vmul.f32 %v1460, %v1607
        %v1685 = vmul.f32 %v1461, %v1612
        %v1686 = vmul.f32 %v1462, %v1617
        %v1687 = vmul.f32 %v1463, %v1622
        %v1688 = vmul.f32 %v1464, %v1627
        %v1689 = vmul.f32 %v1465, %v1632
        %v1690 = vmul.f32 %v1466, %v1637
        %v1691 = vmul.f32 %v1467, %v1642
        %v1692 = vmul.f32 %v1468, %v1647
        %v1693 = vmul.f32 %v1469, %v1652
        %v1694 = vmul.f32 %v1470, %v1657
        %v1695 = vmul.f32 %v1471, %v1662
        %v1696 = vadd.f32 %v1664, %v1665
        %v1697 = vadd.f32 %v1696, %v1666
        %v1698 = vadd.f32 %v1697, %v1667
        %v1699 = vadd.f32 %v1698, %v1668
        %v1700 = vadd.f32 %v1699, %v1669
        %v1701 = vadd.f32 %v1700, %v1670
        %v1702 = vadd.f32 %v1701, %v1671
        %v1703 = vadd.f32 %v1702, %v1672
        %v1704 = vadd.f32 %v1703, %v1673
        %v1705 = vadd.f32 %v1704, %v1674
        %v1706 = vadd.f32 %v1705, %v1675
        %v1707 = vadd.f32 %v1706, %v1676
        %v1708 = vadd.f32 %v1707, %v1677
        %v1709 = vadd.f32 %v1708, %v1678
        %v1710 = vadd.f32 %v1709, %v1679
        %v1711 = vadd.f32 %v1710, %v1680
        %v1712 = vadd.f32 %v1711, %v1681
        %v1713 = vadd.f32 %v1712, %v1682
        %v1714 = vadd.f32 %v1713, %v1683
        %v1715 = vadd.f32 %v1714, %v1684
        %v1716 = vadd.f32 %v1715, %v1685
        %v1717 = vadd.f32 %v1716, %v1686
        %v1718 = vadd.f32 %v1717, %v1687
        %v1719 = vadd.f32 %v1718, %v1688
        %v1720 = vadd.f32 %v1719, %v1689
        %v1721 = vadd.f32 %v1720, %v1690
        %v1722 = vadd.f32 %v1721, %v1691
        %v1723 = vadd.f32 %v1722, %v1692
        %v1724 = vadd.f32 %v1723, %v1693
        %v1725 = vadd.f32 %v1724, %v1694
        %v1726 = vadd.f32 %v1725, %v1695
        %v1727 = vrot.slane %v1726, 4
        %v1728 = vadd.f32 %v1726, %v1727
        %v1729 = vrot.slane %v1728, 2
        %v1730 = vadd.f32 %v1728, %v1729
        %v1731 = vrot.slane %v1730, 1
        %v1732 = vadd.f32 %v1730, %v1731
        %s1733 = sld [smem:[#allocation2]]
        %v1734 = vstv %s1733
        %v1735 = vadd.f32 %v1732, %v1734
        %1736 = vst [vmem:[%s323] sm:$0x1] %v1735
        %s1737 = sand.u32 %s182, 1
        %s1738 = scalar_lea.sflag [#allocation5], %s1737
        %s1739 = sand.u32 %s182, 1
        %s1740 = scalar_lea.vmem [#allocation4], %s1739
        // Predicated region
        $region90: #{tpu_custom_call.1} parent=84 // pred_check
          %p1741 = pneg %p192
        $region91: #{tpu_custom_call.1} parent=84 // pred_check_branch
          %1743 = sbr.rel (%p1741) target = $region93
        $region92: #{tpu_custom_call.1} parent=84 // pred_region
          %s1745 = ssub.s32 16, 16
          %1746 = vsyncadd %s1738, %s1745
          %s1747 = smul.addr %s22, 16
          %s1748 = scalar_lea.hbm %s7, %s1747
          %s1750 = sshll.u32 %s1740, 4
          %s1751 = int_to_ptr.vmem [resolvable:$true] %s1750
          %1753 = dma.vmem_to_hbm [thread:$0]  %s1751, 16, %s1748, %s1738
        $region93: #{tpu_custom_call.1} parent=84 // pred_fallthru
          _
      $region85: #{tpu_custom_call.1} parent=5 // pred_fallthru
        _
      %p1754 = scmp.le.s32.totalorder 2, %s17
      // Predicated region
      $region94: #{tpu_custom_call.1} parent=5 // pred_check
        %p1755 = pneg %p1754
      $region95: #{tpu_custom_call.1} parent=5 // pred_check_branch
        %1757 = sbr.rel (%p1755) target = $region97
      $region96: #{tpu_custom_call.1} parent=5 // pred_region
        %s1758 = ssub.s32 %s17, 2
        // Predicated region
        $region98: #{tpu_custom_call.1} parent=96 // pred_check
          %p1759 = pneg %p198
        $region99: #{tpu_custom_call.1} parent=96 // pred_check_branch
          %1761 = sbr.rel (%p1759) target = $region101
        $region100: #{tpu_custom_call.1} parent=96 // pred_region
          %s1762 = sand.u32 %s183, 1
          %s1763 = scalar_lea.sflag [#allocation5], %s1762
          %s1764 = sand.u32 %s183, 1
          %s1765 = scalar_lea.vmem [#allocation4], %s1764
          %1766 = dma.done %s1763, 16
        $region101: #{tpu_custom_call.1} parent=96 // pred_fallthru
          _
      $region97: #{tpu_custom_call.1} parent=5 // pred_fallthru
        _
    $region6: #{tpu_custom_call.1} parent=1 // loop_footer
      %s21 = sadd.s32 1, %s17
    $region7: #{tpu_custom_call.1} parent=1 // loop_footer_branch
      %16 = sbr.rel target = $region3
    $region8: #{tpu_custom_call.1} parent=1 // loop_exit
      _
    %1767 = vsyncpa [#allocation5], 1
    %s1768 = scalar_lea.sflag [#allocation5], 1
    %1769 = vsyncpa %s1768, 1

</llo_original>
